<compile_context>
chip_gen: v6e
topology: v6e:2x2x1
jax: 0.10.0
libtpu: 0.0.40
codegen_flags: <defaults>
</compile_context>

<pallas_src>
import functools

import jax
import jax.numpy as jnp
from jax.experimental import pallas as pl
from jax.experimental.pallas import tpu as pltpu


def _aae_fwd_kernel(x_ref, w1_ref, b1_ref, w2_ref, b2_ref, wa_ref,
                    aenc_ref, adec_ref, w3_ref, b3_ref, w4_ref, b4_ref,
                    out_ref, *, zd, xd):
    """One batch tile.  Activations are (feature*node, TB): batch in lanes."""
    wdt = w1_ref.dtype                                   # MLP compute dtype
    adt = aenc_ref.dtype                                 # adjacency compute dtype
    x = x_ref[...]                                       # (X*D, TB) float32

    # --- encoder MLP: H1 = relu(kron(W1,I_D) x + b1); en_x = kron(W2,I_D) H1 + b2
    h1 = jnp.maximum(
        jnp.dot(w1_ref[...], x.astype(wdt),
                preferred_element_type=jnp.float32) + b1_ref[...], 0.0)    # (H*D, TB)
    enx = jnp.dot(w2_ref[...], h1.astype(wdt),
                  preferred_element_type=jnp.float32) + b2_ref[...]        # (Z*D, TB)

    wa = wa_ref[...]                                     # (Z*D, 1), lane-broadcast

    # --- adjacency for ALL samples at once: one matmul by kron(I_Z, I-A1^T)
    #     resp. kron(I_Z, inv(I-A1^T)); operator size depends only on (Z, D).
    logits = jnp.dot(aenc_ref[...], (enx + wa).astype(adt),
                     preferred_element_type=jnp.float32) - wa              # (Z*D, TB)
    matz = jnp.dot(adec_ref[...], (logits + wa).astype(adt),
                   preferred_element_type=jnp.float32) - wa                # (Z*D, TB)

    # --- decoder MLP: H3 = relu(kron(W3,I_D) mat_z + b3); de = kron(W4,I_D) H3 + b4
    h3 = jnp.maximum(
        jnp.dot(w3_ref[...], matz.astype(wdt),
                preferred_element_type=jnp.float32) + b3_ref[...], 0.0)    # (H*D, TB)
    de = jnp.dot(w4_ref[...], h3.astype(wdt),
                 preferred_element_type=jnp.float32) + b4_ref[...]         # (X*D, TB)

    # Fused lane-dense output slab [ en_x ; logits ; mat_z ; de_out ] along
    # sublanes; static sublane-aligned slice writes, no concatenate.
    out_ref[0 * zd:1 * zd, :] = enx.astype(out_ref.dtype)
    out_ref[1 * zd:2 * zd, :] = logits.astype(out_ref.dtype)
    out_ref[2 * zd:3 * zd, :] = matz.astype(out_ref.dtype)
    out_ref[3 * zd:3 * zd + xd, :] = de.astype(out_ref.dtype)


def _plan_batch_tiling(batch, target_tb=512):
    """Return (TB, padded_batch, num_tiles) for the lane (batch) axis.

    Lane tiles must be multiples of 128 unless they span the whole (padded)
    batch.  For large batches keep >= 2 tiles so the 'parallel' grid axis can
    be split across v7x's two TensorCores.
    """
    if batch < 256:
        return batch, batch, 1                   # single full tile (any lane width ok)
    half = (batch // 2 // 128) * 128             # largest 128-multiple <= batch/2
    tb = max(128, min(target_tb, half))
    b_pad = -(-batch // tb) * tb
    return tb, b_pad, b_pad // tb


def aae_wgan_gp_forward(inputs, params, *, compute_dtype=jnp.float32):
    """inputs: (B, D, X) float32.  Returns (en_x, logits, adj_A1, mat_z, de_out).

    Implements the data_type != 'benchmark' branch (ReLU activations, vector Wa).
    compute_dtype=jnp.bfloat16 feeds bf16 operands to every dot (MLP *and*
    adjacency) with f32 accumulation; default float32 matches the reference.
    """
    B, D, X = inputs.shape
    H_enc = params["W1"].shape[0]
    Z = params["W2"].shape[0]
    H_dec = params["W3"].shape[0]
    f32 = jnp.float32

    # ---- parameter preprocessing (glue, not the hot path) -------------------
    adj_A1 = jnp.sinh(3.0 * params["adj_A"]).astype(f32)                 # (D, D)
    eye_d = jnp.eye(D, dtype=f32)
    a_enc = eye_d - adj_A1.T                                             # preprocess_adj_new
    # TODO(synk): matrix inverse has no Pallas primitive; computed in plain JAX
    # float32 (the PyTorch reference runs float64).
    a_dec = jnp.linalg.inv(eye_d - adj_A1.T)                             # preprocess_adj_new1

    eye_D = jnp.eye(D, dtype=f32)
    eye_Z = jnp.eye(Z, dtype=f32)
    ones_D = jnp.ones((D,), f32)

    # Weight-stationary operators (sizes depend only on model dims, not on TB).
    w1k = jnp.kron(params["W1"].astype(f32), eye_D).astype(compute_dtype)   # (H*D, X*D)
    w2k = jnp.kron(params["W2"].astype(f32), eye_D).astype(compute_dtype)   # (Z*D, H*D)
    w3k = jnp.kron(params["W3"].astype(f32), eye_D).astype(compute_dtype)   # (H*D, Z*D)
    w4k = jnp.kron(params["W4"].astype(f32), eye_D).astype(compute_dtype)   # (X*D, H*D)
    aenck = jnp.kron(eye_Z, a_enc).astype(compute_dtype)                    # (Z*D, Z*D)
    adeck = jnp.kron(eye_Z, a_dec).astype(compute_dtype)                    # (Z*D, Z*D)

    b1k = jnp.kron(params["b1"].astype(f32), ones_D).reshape(H_enc * D, 1)
    b2k = jnp.kron(params["b2"].astype(f32), ones_D).reshape(Z * D, 1)
    b3k = jnp.kron(params["b3"].astype(f32), ones_D).reshape(H_dec * D, 1)
    b4k = jnp.kron(params["b4"].astype(f32), ones_D).reshape(X * D, 1)
    wak = jnp.kron(params["Wa"].astype(f32), ones_D).reshape(Z * D, 1)

    # Activations as (feature*node, batch): batch in lanes.
    x_k = jnp.transpose(inputs.astype(f32), (2, 1, 0)).reshape(X * D, B)

    TB, B_pad, n_tiles = _plan_batch_tiling(B)
    if B_pad != B:
        x_k = jnp.pad(x_k, ((0, 0), (0, B_pad - B)))

    F_total = 3 * Z * D + X * D

    # Grid-invariant operators live whole in VMEM: fetched once, never
    # double-buffered (total ~140 KiB at demo sizes -> trivially fits v7x 64 MiB).
    vmem_whole = pl.BlockSpec(memory_space=pltpu.MemorySpace.VMEM)

    in_specs = [
        pl.BlockSpec((X * D, TB), lambda g: (0, g)),     # x, one batch-lane tile
        vmem_whole, vmem_whole,                          # kron(W1,I_D), b1
        vmem_whole, vmem_whole,                          # kron(W2,I_D), b2
        vmem_whole,                                      # Wa
        vmem_whole, vmem_whole,                          # kron(I_Z, I-A^T), kron(I_Z, inv)
        vmem_whole, vmem_whole,                          # kron(W3,I_D), b3
        vmem_whole, vmem_whole,                          # kron(W4,I_D), b4
    ]
    out_specs = pl.BlockSpec((F_total, TB), lambda g: (0, g))
    out_shape = jax.ShapeDtypeStruct((F_total, B_pad), f32)

    kernel = functools.partial(_aae_fwd_kernel, zd=Z * D, xd=X * D)

    fused = pl.pallas_call(
        kernel,
        out_shape=out_shape,
        grid=(n_tiles,),
        in_specs=in_specs,
        out_specs=out_specs,
        compiler_params=pltpu.CompilerParams(
            dimension_semantics=("parallel",),           # v7x: shard tiles over 2 TCs
            vmem_limit_bytes=48 * 1024 * 1024,           # headroom on v7x's 64 MiB
        ),
    )(x_k, w1k, b1k, w2k, b2k, wak, aenck, adeck, w3k, b3k, w4k, b4k)

    fused = fused[:, :B]                                 # drop batch padding

    def _unslab(slab, feat):                             # (feat*D, B) -> (B, D, feat)
        return jnp.transpose(slab.reshape(feat, D, B), (2, 1, 0))

    en_x = _unslab(fused[0 * Z * D:1 * Z * D], Z)
    logits = _unslab(fused[1 * Z * D:2 * Z * D], Z)
    mat_z = _unslab(fused[2 * Z * D:3 * Z * D], Z)
    de_out = _unslab(fused[3 * Z * D:3 * Z * D + X * D], X)
    return en_x, logits, adj_A1, mat_z, de_out


def _xavier_normal(key, out_dim, in_dim):
    std = (2.0 / (in_dim + out_dim)) ** 0.5
    return std * jax.random.normal(key, (out_dim, in_dim), dtype=jnp.float32)


def _reference_forward(inputs, params):
    """Plain-JAX reference mirroring the PyTorch module (float32)."""
    adj_A1 = jnp.sinh(3.0 * params["adj_A"])
    D = adj_A1.shape[0]
    eye = jnp.eye(D, dtype=inputs.dtype)
    a_enc = eye - adj_A1.T
    a_dec = jnp.linalg.inv(eye - adj_A1.T)
    wa = params["Wa"]
    h1 = jax.nn.relu(jnp.einsum("bdx,hx->bdh", inputs, params["W1"]) + params["b1"])
    enx = jnp.einsum("bdh,zh->bdz", h1, params["W2"]) + params["b2"]
    logits = jnp.einsum("ij,bjz->biz", a_enc, enx + wa) - wa
    matz = jnp.einsum("ij,bjz->biz", a_dec, logits + wa) - wa
    h3 = jax.nn.relu(jnp.einsum("bdz,hz->bdh", matz, params["W3"]) + params["b3"])
    de = jnp.einsum("bdh,xh->bdx", h3, params["W4"]) + params["b4"]
    return enx, logits, adj_A1, matz, de


if __name__ == "__main__":
    # Small shapes consistent with the module: batch=4, data_variable_size(D)=8,
    # x_dims=4, encoder_hidden=32, z_dims=4, decoder_hidden=32, data_type='synthetic'.
    B, D, X, H_ENC, Z, H_DEC = 4, 8, 4, 32, 4, 32

    key = jax.random.PRNGKey(0)
    k_in, k_adj, k1, k2, k3, k4 = jax.random.split(key, 6)

    params = {
        # encoder
        "adj_A": 0.1 * jax.random.normal(k_adj, (D, D), dtype=jnp.float32),
        "W1": _xavier_normal(k1, H_ENC, X),
        "b1": jnp.zeros((H_ENC,), jnp.float32),
        "W2": _xavier_normal(k2, Z, H_ENC),
        "b2": jnp.zeros((Z,), jnp.float32),
        "Wa": jnp.zeros((Z,), jnp.float32),              # data_type != 'benchmark'
        # decoder
        "W3": _xavier_normal(k3, H_DEC, Z),
        "b3": jnp.zeros((H_DEC,), jnp.float32),
        "W4": _xavier_normal(k4, X, H_DEC),
        "b4": jnp.zeros((X,), jnp.float32),
    }

    inputs = jax.random.normal(k_in, (B, D, X), dtype=jnp.float32)

    outs = aae_wgan_gp_forward(inputs, params)           # default f32 compute
    outs = jax.block_until_ready(outs)

    refs = _reference_forward(inputs, params)
    for o, r in zip(outs, refs):
        assert o.shape == r.shape and o.dtype == r.dtype
        assert jnp.allclose(o, r, atol=2e-4, rtol=2e-4), "mismatch vs reference"

    print("KERNEL_OK")
</pallas_src>

<mosaic_0001>
module attributes {stable_mosaic.version = 11 : i64} {
  func.func @_aae_fwd_kernel(%arg0: i32, %arg1: memref<32x4xf32, #tpu.memory_space<vmem>>, %arg2: memref<256x32xf32, #tpu.memory_space<vmem>>, %arg3: memref<256x1xf32, #tpu.memory_space<vmem>>, %arg4: memref<32x256xf32, #tpu.memory_space<vmem>>, %arg5: memref<32x1xf32, #tpu.memory_space<vmem>>, %arg6: memref<32x1xf32, #tpu.memory_space<vmem>>, %arg7: memref<32x32xf32, #tpu.memory_space<vmem>>, %arg8: memref<32x32xf32, #tpu.memory_space<vmem>>, %arg9: memref<256x32xf32, #tpu.memory_space<vmem>>, %arg10: memref<256x1xf32, #tpu.memory_space<vmem>>, %arg11: memref<32x256xf32, #tpu.memory_space<vmem>>, %arg12: memref<32x1xf32, #tpu.memory_space<vmem>>, %arg13: memref<128x4xf32, #tpu.memory_space<vmem>>) attributes {dimension_semantics = [#tpu.dimension_semantics<parallel>], iteration_bounds = array<i64: 1>, scalar_prefetch = 0 : i64, scratch_operands = 0 : i64, tpu.core_type = #tpu.core_type<tc>, window_params = [{transform_indices = @transform_0, window_bounds = array<i64: 32, 4>}, {pipeline_mode = #tpu.pipeline_mode<synchronous>, transform_indices = @transform_1, window_bounds = array<i64: 256, 32>}, {pipeline_mode = #tpu.pipeline_mode<synchronous>, transform_indices = @transform_2, window_bounds = array<i64: 256, 1>}, {pipeline_mode = #tpu.pipeline_mode<synchronous>, transform_indices = @transform_3, window_bounds = array<i64: 32, 256>}, {pipeline_mode = #tpu.pipeline_mode<synchronous>, transform_indices = @transform_4, window_bounds = array<i64: 32, 1>}, {pipeline_mode = #tpu.pipeline_mode<synchronous>, transform_indices = @transform_5, window_bounds = array<i64: 32, 1>}, {pipeline_mode = #tpu.pipeline_mode<synchronous>, transform_indices = @transform_6, window_bounds = array<i64: 32, 32>}, {pipeline_mode = #tpu.pipeline_mode<synchronous>, transform_indices = @transform_7, window_bounds = array<i64: 32, 32>}, {pipeline_mode = #tpu.pipeline_mode<synchronous>, transform_indices = @transform_8, window_bounds = array<i64: 256, 32>}, {pipeline_mode = #tpu.pipeline_mode<synchronous>, transform_indices = @transform_9, window_bounds = array<i64: 256, 1>}, {pipeline_mode = #tpu.pipeline_mode<synchronous>, transform_indices = @transform_10, window_bounds = array<i64: 32, 256>}, {pipeline_mode = #tpu.pipeline_mode<synchronous>, transform_indices = @transform_11, window_bounds = array<i64: 32, 1>}, {transform_indices = @transform_12, window_bounds = array<i64: 128, 4>}]} {
    %c0 = arith.constant 0 : index
    %c0_0 = arith.constant 0 : index
    %0 = vector.load %arg1[%c0, %c0_0] : memref<32x4xf32, #tpu.memory_space<vmem>>, vector<32x4xf32>
    %c0_1 = arith.constant 0 : index
    %c0_2 = arith.constant 0 : index
    %1 = vector.load %arg2[%c0_1, %c0_2] : memref<256x32xf32, #tpu.memory_space<vmem>>, vector<256x32xf32>
    %cst = arith.constant dense<0.000000e+00> : vector<256x4xf32>
    %2 = tpu.matmul %1, %0, %cst {dimension_numbers = #tpu.dot_dimension_numbers<[1], [0], [0], [1], [0, 0, 1, 1], [], []>} : vector<256x32xf32>, vector<32x4xf32>, vector<256x4xf32> -> vector<256x4xf32>
    %c0_3 = arith.constant 0 : index
    %c0_4 = arith.constant 0 : index
    %3 = vector.load %arg3[%c0_3, %c0_4] : memref<256x1xf32, #tpu.memory_space<vmem>>, vector<256x1xf32>
    %4 = vector.broadcast %3 : vector<256x1xf32> to vector<256x4xf32>
    %5 = arith.addf %2, %4 : vector<256x4xf32>
    %cst_5 = arith.constant 0.000000e+00 : f32
    %6 = vector.broadcast %cst_5 : f32 to vector<256x4xf32>
    %7 = arith.maximumf %5, %6 : vector<256x4xf32>
    %c0_6 = arith.constant 0 : index
    %c0_7 = arith.constant 0 : index
    %8 = vector.load %arg4[%c0_6, %c0_7] : memref<32x256xf32, #tpu.memory_space<vmem>>, vector<32x256xf32>
    %cst_8 = arith.constant dense<0.000000e+00> : vector<32x4xf32>
    %9 = tpu.matmul %8, %7, %cst_8 {dimension_numbers = #tpu.dot_dimension_numbers<[1], [0], [0], [1], [0, 0, 1, 1], [], []>} : vector<32x256xf32>, vector<256x4xf32>, vector<32x4xf32> -> vector<32x4xf32>
    %c0_9 = arith.constant 0 : index
    %c0_10 = arith.constant 0 : index
    %10 = vector.load %arg5[%c0_9, %c0_10] : memref<32x1xf32, #tpu.memory_space<vmem>>, vector<32x1xf32>
    %11 = vector.broadcast %10 : vector<32x1xf32> to vector<32x4xf32>
    %12 = arith.addf %9, %11 : vector<32x4xf32>
    %c0_11 = arith.constant 0 : index
    %c0_12 = arith.constant 0 : index
    %13 = vector.load %arg6[%c0_11, %c0_12] : memref<32x1xf32, #tpu.memory_space<vmem>>, vector<32x1xf32>
    %c0_13 = arith.constant 0 : index
    %c0_14 = arith.constant 0 : index
    %14 = vector.load %arg7[%c0_13, %c0_14] : memref<32x32xf32, #tpu.memory_space<vmem>>, vector<32x32xf32>
    %15 = vector.broadcast %13 : vector<32x1xf32> to vector<32x4xf32>
    %16 = arith.addf %12, %15 : vector<32x4xf32>
    %cst_15 = arith.constant dense<0.000000e+00> : vector<32x4xf32>
    %17 = tpu.matmul %14, %16, %cst_15 {dimension_numbers = #tpu.dot_dimension_numbers<[1], [0], [0], [1], [0, 0, 1, 1], [], []>} : vector<32x32xf32>, vector<32x4xf32>, vector<32x4xf32> -> vector<32x4xf32>
    %18 = vector.broadcast %13 : vector<32x1xf32> to vector<32x4xf32>
    %19 = arith.subf %17, %18 : vector<32x4xf32>
    %c0_16 = arith.constant 0 : index
    %c0_17 = arith.constant 0 : index
    %20 = vector.load %arg8[%c0_16, %c0_17] : memref<32x32xf32, #tpu.memory_space<vmem>>, vector<32x32xf32>
    %21 = vector.broadcast %13 : vector<32x1xf32> to vector<32x4xf32>
    %22 = arith.addf %19, %21 : vector<32x4xf32>
    %cst_18 = arith.constant dense<0.000000e+00> : vector<32x4xf32>
    %23 = tpu.matmul %20, %22, %cst_18 {dimension_numbers = #tpu.dot_dimension_numbers<[1], [0], [0], [1], [0, 0, 1, 1], [], []>} : vector<32x32xf32>, vector<32x4xf32>, vector<32x4xf32> -> vector<32x4xf32>
    %24 = vector.broadcast %13 : vector<32x1xf32> to vector<32x4xf32>
    %25 = arith.subf %23, %24 : vector<32x4xf32>
    %c0_19 = arith.constant 0 : index
    %c0_20 = arith.constant 0 : index
    %26 = vector.load %arg9[%c0_19, %c0_20] : memref<256x32xf32, #tpu.memory_space<vmem>>, vector<256x32xf32>
    %cst_21 = arith.constant dense<0.000000e+00> : vector<256x4xf32>
    %27 = tpu.matmul %26, %25, %cst_21 {dimension_numbers = #tpu.dot_dimension_numbers<[1], [0], [0], [1], [0, 0, 1, 1], [], []>} : vector<256x32xf32>, vector<32x4xf32>, vector<256x4xf32> -> vector<256x4xf32>
    %c0_22 = arith.constant 0 : index
    %c0_23 = arith.constant 0 : index
    %28 = vector.load %arg10[%c0_22, %c0_23] : memref<256x1xf32, #tpu.memory_space<vmem>>, vector<256x1xf32>
    %29 = vector.broadcast %28 : vector<256x1xf32> to vector<256x4xf32>
    %30 = arith.addf %27, %29 : vector<256x4xf32>
    %cst_24 = arith.constant 0.000000e+00 : f32
    %31 = vector.broadcast %cst_24 : f32 to vector<256x4xf32>
    %32 = arith.maximumf %30, %31 : vector<256x4xf32>
    %c0_25 = arith.constant 0 : index
    %c0_26 = arith.constant 0 : index
    %33 = vector.load %arg11[%c0_25, %c0_26] : memref<32x256xf32, #tpu.memory_space<vmem>>, vector<32x256xf32>
    %cst_27 = arith.constant dense<0.000000e+00> : vector<32x4xf32>
    %34 = tpu.matmul %33, %32, %cst_27 {dimension_numbers = #tpu.dot_dimension_numbers<[1], [0], [0], [1], [0, 0, 1, 1], [], []>} : vector<32x256xf32>, vector<256x4xf32>, vector<32x4xf32> -> vector<32x4xf32>
    %c0_28 = arith.constant 0 : index
    %c0_29 = arith.constant 0 : index
    %35 = vector.load %arg12[%c0_28, %c0_29] : memref<32x1xf32, #tpu.memory_space<vmem>>, vector<32x1xf32>
    %36 = vector.broadcast %35 : vector<32x1xf32> to vector<32x4xf32>
    %37 = arith.addf %34, %36 : vector<32x4xf32>
    %c0_30 = arith.constant 0 : index
    %c0_31 = arith.constant 0 : index
    %38 = vector.load %arg13[%c0_30, %c0_31] : memref<128x4xf32, #tpu.memory_space<vmem>>, vector<32x4xf32>
    tpu.vector_store %arg13[%c0_30, %c0_31], %12 {strides = array<i32>} : memref<128x4xf32, #tpu.memory_space<vmem>>, vector<32x4xf32>,
    %c32 = arith.constant 32 : index
    %c0_32 = arith.constant 0 : index
    %39 = vector.load %arg13[%c32, %c0_32] : memref<128x4xf32, #tpu.memory_space<vmem>>, vector<32x4xf32>
    tpu.vector_store %arg13[%c32, %c0_32], %19 {strides = array<i32>} : memref<128x4xf32, #tpu.memory_space<vmem>>, vector<32x4xf32>,
    %c64 = arith.constant 64 : index
    %c0_33 = arith.constant 0 : index
    %40 = vector.load %arg13[%c64, %c0_33] : memref<128x4xf32, #tpu.memory_space<vmem>>, vector<32x4xf32>
    tpu.vector_store %arg13[%c64, %c0_33], %25 {strides = array<i32>} : memref<128x4xf32, #tpu.memory_space<vmem>>, vector<32x4xf32>,
    %c96 = arith.constant 96 : index
    %c0_34 = arith.constant 0 : index
    %41 = vector.load %arg13[%c96, %c0_34] : memref<128x4xf32, #tpu.memory_space<vmem>>, vector<32x4xf32>
    tpu.vector_store %arg13[%c96, %c0_34], %37 {strides = array<i32>} : memref<128x4xf32, #tpu.memory_space<vmem>>, vector<32x4xf32>,
    return
  }
  func.func @transform_0(%arg0: i32) -> (i32, i32) {
    %c0_i32 = arith.constant 0 : i32
    %c0_i32_0 = arith.constant 0 : i32
    return %c0_i32, %arg0 : i32, i32
  }
  func.func @transform_1(%arg0: i32) -> (i32, i32) {
    %c0_i32 = arith.constant 0 : i32
    %c0_i32_0 = arith.constant 0 : i32
    %c0_i32_1 = arith.constant 0 : i32
    return %c0_i32, %c0_i32_0 : i32, i32
  }
  func.func @transform_2(%arg0: i32) -> (i32, i32) {
    %c0_i32 = arith.constant 0 : i32
    %c0_i32_0 = arith.constant 0 : i32
    %c0_i32_1 = arith.constant 0 : i32
    return %c0_i32, %c0_i32_0 : i32, i32
  }
  func.func @transform_3(%arg0: i32) -> (i32, i32) {
    %c0_i32 = arith.constant 0 : i32
    %c0_i32_0 = arith.constant 0 : i32
    %c0_i32_1 = arith.constant 0 : i32
    return %c0_i32, %c0_i32_0 : i32, i32
  }
  func.func @transform_4(%arg0: i32) -> (i32, i32) {
    %c0_i32 = arith.constant 0 : i32
    %c0_i32_0 = arith.constant 0 : i32
    %c0_i32_1 = arith.constant 0 : i32
    return %c0_i32, %c0_i32_0 : i32, i32
  }
  func.func @transform_5(%arg0: i32) -> (i32, i32) {
    %c0_i32 = arith.constant 0 : i32
    %c0_i32_0 = arith.constant 0 : i32
    %c0_i32_1 = arith.constant 0 : i32
    return %c0_i32, %c0_i32_0 : i32, i32
  }
  func.func @transform_6(%arg0: i32) -> (i32, i32) {
    %c0_i32 = arith.constant 0 : i32
    %c0_i32_0 = arith.constant 0 : i32
    %c0_i32_1 = arith.constant 0 : i32
    return %c0_i32, %c0_i32_0 : i32, i32
  }
  func.func @transform_7(%arg0: i32) -> (i32, i32) {
    %c0_i32 = arith.constant 0 : i32
    %c0_i32_0 = arith.constant 0 : i32
    %c0_i32_1 = arith.constant 0 : i32
    return %c0_i32, %c0_i32_0 : i32, i32
  }
  func.func @transform_8(%arg0: i32) -> (i32, i32) {
    %c0_i32 = arith.constant 0 : i32
    %c0_i32_0 = arith.constant 0 : i32
    %c0_i32_1 = arith.constant 0 : i32
    return %c0_i32, %c0_i32_0 : i32, i32
  }
  func.func @transform_9(%arg0: i32) -> (i32, i32) {
    %c0_i32 = arith.constant 0 : i32
    %c0_i32_0 = arith.constant 0 : i32
    %c0_i32_1 = arith.constant 0 : i32
    return %c0_i32, %c0_i32_0 : i32, i32
  }
  func.func @transform_10(%arg0: i32) -> (i32, i32) {
    %c0_i32 = arith.constant 0 : i32
    %c0_i32_0 = arith.constant 0 : i32
    %c0_i32_1 = arith.constant 0 : i32
    return %c0_i32, %c0_i32_0 : i32, i32
  }
  func.func @transform_11(%arg0: i32) -> (i32, i32) {
    %c0_i32 = arith.constant 0 : i32
    %c0_i32_0 = arith.constant 0 : i32
    %c0_i32_1 = arith.constant 0 : i32
    return %c0_i32, %c0_i32_0 : i32, i32
  }
  func.func @transform_12(%arg0: i32) -> (i32, i32) {
    %c0_i32 = arith.constant 0 : i32
    %c0_i32_0 = arith.constant 0 : i32
    return %c0_i32, %arg0 : i32, i32
  }
}

</mosaic_0001>

<llo_original>
// kernel: tpu_custom_call.1
$region0: #{tpu_custom_call.1}
  #allocation0 [shape = 'u32[]', space=smem, size = 0x4, offset = 0x4, fixed_abs, tag = 'smem constant byte address 0x4 - core index']
  #allocation1 [shape = 'u32[144,128]{1,0:T(1,128)}', space=vmem, size = 0x12000, scoped, tag = 'internal scratch']
  %s0 = inlined_call_operand.vmem [shape: f32[32,4], index: 0, kind: input, shape index: {}]
  %s1 = inlined_call_operand.vmem [shape: f32[256,32], index: 1, kind: input, shape index: {}]
  %s2 = inlined_call_operand.vmem [shape: f32[256,1], index: 2, kind: input, shape index: {}]
  %s3 = inlined_call_operand.vmem [shape: f32[32,256], index: 3, kind: input, shape index: {}]
  %s4 = inlined_call_operand.vmem [shape: f32[32,1], index: 4, kind: input, shape index: {}]
  %s5 = inlined_call_operand.vmem [shape: f32[32,1], index: 5, kind: input, shape index: {}]
  %s6 = inlined_call_operand.vmem [shape: f32[32,32], index: 6, kind: input, shape index: {}]
  %s7 = inlined_call_operand.vmem [shape: f32[32,32], index: 7, kind: input, shape index: {}]
  %s8 = inlined_call_operand.vmem [shape: f32[256,32], index: 8, kind: input, shape index: {}]
  %s9 = inlined_call_operand.vmem [shape: f32[256,1], index: 9, kind: input, shape index: {}]
  %s10 = inlined_call_operand.vmem [shape: f32[32,256], index: 10, kind: input, shape index: {}]
  %s11 = inlined_call_operand.vmem [shape: f32[32,1], index: 11, kind: input, shape index: {}]
  %s12 = inlined_call_operand.vmem [shape: f32[128,4], index: 12, kind: output, shape index: {}]
  %s13 = sld [smem:[#allocation0]]
  $region58: #{tpu_custom_call.1} parent=0
    _
  %s15 = ssub.s32 1, %s13
  %s16 = scalar_select 0, %s15, %s13
  // Predicated region
  $region2: #{tpu_custom_call.1} parent=0 // pred_check
    _
  $region3: #{tpu_custom_call.1} parent=0 // pred_check_branch
    %18 = sbr.rel (0) target = $region5
  $region4: #{tpu_custom_call.1} parent=0 // pred_region
    _
  $region5: #{tpu_custom_call.1} parent=0 // pred_fallthru
    _
  // Predicated region
  $region6: #{tpu_custom_call.1} parent=0 // pred_check
    _
  $region7: #{tpu_custom_call.1} parent=0 // pred_check_branch
    %20 = sbr.rel (0) target = $region9
  $region8: #{tpu_custom_call.1} parent=0 // pred_region
    _
  $region9: #{tpu_custom_call.1} parent=0 // pred_fallthru
    _
  // Predicated region
  $region10: #{tpu_custom_call.1} parent=0 // pred_check
    _
  $region11: #{tpu_custom_call.1} parent=0 // pred_check_branch
    %22 = sbr.rel (0) target = $region13
  $region12: #{tpu_custom_call.1} parent=0 // pred_region
    _
  $region13: #{tpu_custom_call.1} parent=0 // pred_fallthru
    _
  // Predicated region
  $region14: #{tpu_custom_call.1} parent=0 // pred_check
    _
  $region15: #{tpu_custom_call.1} parent=0 // pred_check_branch
    %24 = sbr.rel (0) target = $region17
  $region16: #{tpu_custom_call.1} parent=0 // pred_region
    _
  $region17: #{tpu_custom_call.1} parent=0 // pred_fallthru
    _
  // Predicated region
  $region18: #{tpu_custom_call.1} parent=0 // pred_check
    _
  $region19: #{tpu_custom_call.1} parent=0 // pred_check_branch
    %26 = sbr.rel (0) target = $region21
  $region20: #{tpu_custom_call.1} parent=0 // pred_region
    _
  $region21: #{tpu_custom_call.1} parent=0 // pred_fallthru
    _
  // Predicated region
  $region22: #{tpu_custom_call.1} parent=0 // pred_check
    _
  $region23: #{tpu_custom_call.1} parent=0 // pred_check_branch
    %28 = sbr.rel (0) target = $region25
  $region24: #{tpu_custom_call.1} parent=0 // pred_region
    _
  $region25: #{tpu_custom_call.1} parent=0 // pred_fallthru
    _
  // Predicated region
  $region26: #{tpu_custom_call.1} parent=0 // pred_check
    _
  $region27: #{tpu_custom_call.1} parent=0 // pred_check_branch
    %30 = sbr.rel (0) target = $region29
  $region28: #{tpu_custom_call.1} parent=0 // pred_region
    _
  $region29: #{tpu_custom_call.1} parent=0 // pred_fallthru
    _
  // Predicated region
  $region30: #{tpu_custom_call.1} parent=0 // pred_check
    _
  $region31: #{tpu_custom_call.1} parent=0 // pred_check_branch
    %32 = sbr.rel (0) target = $region33
  $region32: #{tpu_custom_call.1} parent=0 // pred_region
    _
  $region33: #{tpu_custom_call.1} parent=0 // pred_fallthru
    _
  // Predicated region
  $region34: #{tpu_custom_call.1} parent=0 // pred_check
    _
  $region35: #{tpu_custom_call.1} parent=0 // pred_check_branch
    %34 = sbr.rel (0) target = $region37
  $region36: #{tpu_custom_call.1} parent=0 // pred_region
    _
  $region37: #{tpu_custom_call.1} parent=0 // pred_fallthru
    _
  // Predicated region
  $region38: #{tpu_custom_call.1} parent=0 // pred_check
    _
  $region39: #{tpu_custom_call.1} parent=0 // pred_check_branch
    %36 = sbr.rel (0) target = $region41
  $region40: #{tpu_custom_call.1} parent=0 // pred_region
    _
  $region41: #{tpu_custom_call.1} parent=0 // pred_fallthru
    _
  // Predicated region
  $region42: #{tpu_custom_call.1} parent=0 // pred_check
    _
  $region43: #{tpu_custom_call.1} parent=0 // pred_check_branch
    %38 = sbr.rel (0) target = $region45
  $region44: #{tpu_custom_call.1} parent=0 // pred_region
    _
  $region45: #{tpu_custom_call.1} parent=0 // pred_fallthru
    _
  // Predicated region
  $region46: #{tpu_custom_call.1} parent=0 // pred_check
    _
  $region47: #{tpu_custom_call.1} parent=0 // pred_check_branch
    %40 = sbr.rel (0) target = $region49
  $region48: #{tpu_custom_call.1} parent=0 // pred_region
    _
  $region49: #{tpu_custom_call.1} parent=0 // pred_fallthru
    _
  %v41 = vld [vmem:[%s0] sm:$0xff]
  %v42 = vld [vmem:[%s0 + $0x8] sm:$0xff]
  %v43 = vld [vmem:[%s0 + $0x10] sm:$0xff]
  %v44 = vld [vmem:[%s0 + $0x18] sm:$0xff]
  %v45 = vld [vmem:[%s1] sm:$0xff]
  %v46 = vld [vmem:[%s1 + $0x8] sm:$0xff]
  %v47 = vld [vmem:[%s1 + $0x10] sm:$0xff]
  %v48 = vld [vmem:[%s1 + $0x18] sm:$0xff]
  %v49 = vld [vmem:[%s1 + $0x20] sm:$0xff]
  %v50 = vld [vmem:[%s1 + $0x28] sm:$0xff]
  %v51 = vld [vmem:[%s1 + $0x30] sm:$0xff]
  %v52 = vld [vmem:[%s1 + $0x38] sm:$0xff]
  %v53 = vld [vmem:[%s1 + $0x40] sm:$0xff]
  %v54 = vld [vmem:[%s1 + $0x48] sm:$0xff]
  %v55 = vld [vmem:[%s1 + $0x50] sm:$0xff]
  %v56 = vld [vmem:[%s1 + $0x58] sm:$0xff]
  %v57 = vld [vmem:[%s1 + $0x60] sm:$0xff]
  %v58 = vld [vmem:[%s1 + $0x68] sm:$0xff]
  %v59 = vld [vmem:[%s1 + $0x70] sm:$0xff]
  %v60 = vld [vmem:[%s1 + $0x78] sm:$0xff]
  %v61 = vld [vmem:[%s1 + $0x80] sm:$0xff]
  %v62 = vld [vmem:[%s1 + $0x88] sm:$0xff]
  %v63 = vld [vmem:[%s1 + $0x90] sm:$0xff]
  %v64 = vld [vmem:[%s1 + $0x98] sm:$0xff]
  %v65 = vld [vmem:[%s1 + $0xa0] sm:$0xff]
  %v66 = vld [vmem:[%s1 + $0xa8] sm:$0xff]
  %v67 = vld [vmem:[%s1 + $0xb0] sm:$0xff]
  %v68 = vld [vmem:[%s1 + $0xb8] sm:$0xff]
  %v69 = vld [vmem:[%s1 + $0xc0] sm:$0xff]
  %v70 = vld [vmem:[%s1 + $0xc8] sm:$0xff]
  %v71 = vld [vmem:[%s1 + $0xd0] sm:$0xff]
  %v72 = vld [vmem:[%s1 + $0xd8] sm:$0xff]
  %v73 = vld [vmem:[%s1 + $0xe0] sm:$0xff]
  %v74 = vld [vmem:[%s1 + $0xe8] sm:$0xff]
  %v75 = vld [vmem:[%s1 + $0xf0] sm:$0xff]
  %v76 = vld [vmem:[%s1 + $0xf8] sm:$0xff]
  %v77 = vld [vmem:[%s2] sm:$0xff]
  %v78 = vld [vmem:[%s2 + $0x8] sm:$0xff]
  %v79 = vld [vmem:[%s2 + $0x10] sm:$0xff]
  %v80 = vld [vmem:[%s2 + $0x18] sm:$0xff]
  %v81 = vld [vmem:[%s2 + $0x20] sm:$0xff]
  %v82 = vld [vmem:[%s2 + $0x28] sm:$0xff]
  %v83 = vld [vmem:[%s2 + $0x30] sm:$0xff]
  %v84 = vld [vmem:[%s2 + $0x38] sm:$0xff]
  %v85 = vld [vmem:[%s2 + $0x40] sm:$0xff]
  %v86 = vld [vmem:[%s2 + $0x48] sm:$0xff]
  %v87 = vld [vmem:[%s2 + $0x50] sm:$0xff]
  %v88 = vld [vmem:[%s2 + $0x58] sm:$0xff]
  %v89 = vld [vmem:[%s2 + $0x60] sm:$0xff]
  %v90 = vld [vmem:[%s2 + $0x68] sm:$0xff]
  %v91 = vld [vmem:[%s2 + $0x70] sm:$0xff]
  %v92 = vld [vmem:[%s2 + $0x78] sm:$0xff]
  %v93 = vld [vmem:[%s2 + $0x80] sm:$0xff]
  %v94 = vld [vmem:[%s2 + $0x88] sm:$0xff]
  %v95 = vld [vmem:[%s2 + $0x90] sm:$0xff]
  %v96 = vld [vmem:[%s2 + $0x98] sm:$0xff]
  %v97 = vld [vmem:[%s2 + $0xa0] sm:$0xff]
  %v98 = vld [vmem:[%s2 + $0xa8] sm:$0xff]
  %v99 = vld [vmem:[%s2 + $0xb0] sm:$0xff]
  %v100 = vld [vmem:[%s2 + $0xb8] sm:$0xff]
  %v101 = vld [vmem:[%s2 + $0xc0] sm:$0xff]
  %v102 = vld [vmem:[%s2 + $0xc8] sm:$0xff]
  %v103 = vld [vmem:[%s2 + $0xd0] sm:$0xff]
  %v104 = vld [vmem:[%s2 + $0xd8] sm:$0xff]
  %v105 = vld [vmem:[%s2 + $0xe0] sm:$0xff]
  %v106 = vld [vmem:[%s2 + $0xe8] sm:$0xff]
  %v107 = vld [vmem:[%s2 + $0xf0] sm:$0xff]
  %v108 = vld [vmem:[%s2 + $0xf8] sm:$0xff]
  %110 = vset.pattern.permute.xlu0 0
  %111 = vperm.xlu0 %110, %v77
  %v112 = vpop.permute.xlu0 %111
  %115 = vset.pattern.permute.xlu0 0
  %116 = vperm.xlu0 %115, %v78
  %v117 = vpop.permute.xlu0 %116
  %120 = vset.pattern.permute.xlu0 0
  %121 = vperm.xlu0 %120, %v79
  %v122 = vpop.permute.xlu0 %121
  %125 = vset.pattern.permute.xlu0 0
  %126 = vperm.xlu0 %125, %v80
  %v127 = vpop.permute.xlu0 %126
  %130 = vset.pattern.permute.xlu0 0
  %131 = vperm.xlu0 %130, %v81
  %v132 = vpop.permute.xlu0 %131
  %135 = vset.pattern.permute.xlu0 0
  %136 = vperm.xlu0 %135, %v82
  %v137 = vpop.permute.xlu0 %136
  %140 = vset.pattern.permute.xlu0 0
  %141 = vperm.xlu0 %140, %v83
  %v142 = vpop.permute.xlu0 %141
  %145 = vset.pattern.permute.xlu0 0
  %146 = vperm.xlu0 %145, %v84
  %v147 = vpop.permute.xlu0 %146
  %150 = vset.pattern.permute.xlu0 0
  %151 = vperm.xlu0 %150, %v85
  %v152 = vpop.permute.xlu0 %151
  %155 = vset.pattern.permute.xlu0 0
  %156 = vperm.xlu0 %155, %v86
  %v157 = vpop.permute.xlu0 %156
  %160 = vset.pattern.permute.xlu0 0
  %161 = vperm.xlu0 %160, %v87
  %v162 = vpop.permute.xlu0 %161
  %165 = vset.pattern.permute.xlu0 0
  %166 = vperm.xlu0 %165, %v88
  %v167 = vpop.permute.xlu0 %166
  %170 = vset.pattern.permute.xlu0 0
  %171 = vperm.xlu0 %170, %v89
  %v172 = vpop.permute.xlu0 %171
  %175 = vset.pattern.permute.xlu0 0
  %176 = vperm.xlu0 %175, %v90
  %v177 = vpop.permute.xlu0 %176
  %180 = vset.pattern.permute.xlu0 0
  %181 = vperm.xlu0 %180, %v91
  %v182 = vpop.permute.xlu0 %181
  %185 = vset.pattern.permute.xlu0 0
  %186 = vperm.xlu0 %185, %v92
  %v187 = vpop.permute.xlu0 %186
  %190 = vset.pattern.permute.xlu0 0
  %191 = vperm.xlu0 %190, %v93
  %v192 = vpop.permute.xlu0 %191
  %195 = vset.pattern.permute.xlu0 0
  %196 = vperm.xlu0 %195, %v94
  %v197 = vpop.permute.xlu0 %196
  %200 = vset.pattern.permute.xlu0 0
  %201 = vperm.xlu0 %200, %v95
  %v202 = vpop.permute.xlu0 %201
  %205 = vset.pattern.permute.xlu0 0
  %206 = vperm.xlu0 %205, %v96
  %v207 = vpop.permute.xlu0 %206
  %210 = vset.pattern.permute.xlu0 0
  %211 = vperm.xlu0 %210, %v97
  %v212 = vpop.permute.xlu0 %211
  %215 = vset.pattern.permute.xlu0 0
  %216 = vperm.xlu0 %215, %v98
  %v217 = vpop.permute.xlu0 %216
  %220 = vset.pattern.permute.xlu0 0
  %221 = vperm.xlu0 %220, %v99
  %v222 = vpop.permute.xlu0 %221
  %225 = vset.pattern.permute.xlu0 0
  %226 = vperm.xlu0 %225, %v100
  %v227 = vpop.permute.xlu0 %226
  %230 = vset.pattern.permute.xlu0 0
  %231 = vperm.xlu0 %230, %v101
  %v232 = vpop.permute.xlu0 %231
  %235 = vset.pattern.permute.xlu0 0
  %236 = vperm.xlu0 %235, %v102
  %v237 = vpop.permute.xlu0 %236
  %240 = vset.pattern.permute.xlu0 0
  %241 = vperm.xlu0 %240, %v103
  %v242 = vpop.permute.xlu0 %241
  %245 = vset.pattern.permute.xlu0 0
  %246 = vperm.xlu0 %245, %v104
  %v247 = vpop.permute.xlu0 %246
  %250 = vset.pattern.permute.xlu0 0
  %251 = vperm.xlu0 %250, %v105
  %v252 = vpop.permute.xlu0 %251
  %255 = vset.pattern.permute.xlu0 0
  %256 = vperm.xlu0 %255, %v106
  %v257 = vpop.permute.xlu0 %256
  %260 = vset.pattern.permute.xlu0 0
  %261 = vperm.xlu0 %260, %v107
  %v262 = vpop.permute.xlu0 %261
  %265 = vset.pattern.permute.xlu0 0
  %266 = vperm.xlu0 %265, %v108
  %v267 = vpop.permute.xlu0 %266
  %vm269 = vcmask 261120
  %v271 = vsel %vm269, %v45, 0
  %v274 = vsel %vm269, %v46, 0
  %v277 = vsel %vm269, %v47, 0
  %v280 = vsel %vm269, %v48, 0
  %v283 = vsel %vm269, %v49, 0
  %v286 = vsel %vm269, %v50, 0
  %v289 = vsel %vm269, %v51, 0
  %v292 = vsel %vm269, %v52, 0
  %v295 = vsel %vm269, %v53, 0
  %v298 = vsel %vm269, %v54, 0
  %v301 = vsel %vm269, %v55, 0
  %v304 = vsel %vm269, %v56, 0
  %v307 = vsel %vm269, %v57, 0
  %v310 = vsel %vm269, %v58, 0
  %v313 = vsel %vm269, %v59, 0
  %v316 = vsel %vm269, %v60, 0
  %v319 = vsel %vm269, %v61, 0
  %v322 = vsel %vm269, %v62, 0
  %v325 = vsel %vm269, %v63, 0
  %v328 = vsel %vm269, %v64, 0
  %v331 = vsel %vm269, %v65, 0
  %v334 = vsel %vm269, %v66, 0
  %v337 = vsel %vm269, %v67, 0
  %v340 = vsel %vm269, %v68, 0
  %v343 = vsel %vm269, %v69, 0
  %v346 = vsel %vm269, %v70, 0
  %v349 = vsel %vm269, %v71, 0
  %v352 = vsel %vm269, %v72, 0
  %v355 = vsel %vm269, %v73, 0
  %v358 = vsel %vm269, %v74, 0
  %v361 = vsel %vm269, %v75, 0
  %v364 = vsel %vm269, %v76, 0
  %366 = vmatprep.subr.mxu0 0.0
  %367 = vmatpush1.msra.mxu0 0.0
  %368 = vmatprep.subr.mxu0 0.0
  %369 = vmatpush1.msra.mxu0 0.0
  %370 = vmatprep.subr.mxu0 0.0
  %371 = vmatpush1.msra.mxu0 0.0
  %372 = vmatprep.subr.mxu0 0.0
  %373 = vmatpush1.msra.mxu0 0.0
  %374 = vmatprep.subr.mxu0 0.0
  %375 = vmatpush1.msra.mxu0 0.0
  %376 = vmatprep.subr.mxu0 0.0
  %377 = vmatpush1.msra.mxu0 0.0
  %378 = vmatprep.subr.mxu0 0.0
  %379 = vmatpush1.msra.mxu0 0.0
  %380 = vmatprep.subr.mxu0 0.0
  %381 = vmatpush1.msra.mxu0 0.0
  %382 = vmatprep.subr.mxu0 0.0
  %383 = vmatpush1.msra.mxu0 0.0
  %384 = vmatprep.subr.mxu0 0.0
  %385 = vmatpush1.msra.mxu0 0.0
  %386 = vmatprep.subr.mxu0 0.0
  %387 = vmatpush1.msra.mxu0 0.0
  %388 = vmatprep.subr.mxu0 0.0
  %389 = vmatpush1.msra.mxu0 0.0
  %390 = vmatprep.subr.mxu0 0.0
  %391 = vmatpush1.msra.mxu0 %v44
  %392 = vmatprep.subr.mxu0 0.0
  %393 = vmatpush1.msra.mxu0 %v43
  %394 = vmatprep.subr.mxu0 0.0
  %395 = vmatpush1.msra.mxu0 %v42
  %396 = vmatprep.subr.mxu0 0.0
  %397 = vmatpush1.msra.mxu0 %v41
  %398 = vmatprep.subr.mxu0 0.0
  %399 = vmatpush2.msra.mxu0 0.0
  %400 = vmatprep.subr.mxu0 0.0
  %401 = vmatpush2.msra.mxu0 0.0
  %402 = vmatprep.subr.mxu0 0.0
  %403 = vmatpush2.msra.mxu0 0.0
  %404 = vmatprep.subr.mxu0 0.0
  %405 = vmatpush2.msra.mxu0 0.0
  %406 = vmatprep.subr.mxu0 0.0
  %407 = vmatpush2.msra.mxu0 0.0
  %408 = vmatprep.subr.mxu0 0.0
  %409 = vmatpush2.msra.mxu0 0.0
  %410 = vmatprep.subr.mxu0 0.0
  %411 = vmatpush2.msra.mxu0 0.0
  %412 = vmatprep.subr.mxu0 0.0
  %413 = vmatpush2.msra.mxu0 0.0
  %414 = vmatprep.subr.mxu0 0.0
  %415 = vmatpush2.msra.mxu0 0.0
  %416 = vmatprep.subr.mxu0 0.0
  %417 = vmatpush2.msra.mxu0 0.0
  %418 = vmatprep.subr.mxu0 0.0
  %419 = vmatpush2.msra.mxu0 0.0
  %420 = vmatprep.subr.mxu0 0.0
  %421 = vmatpush2.msra.mxu0 0.0
  %422 = vmatprep.subr.mxu0 0.0
  %423 = vmatpush2.msra.mxu0 0.0
  %424 = vmatprep.subr.mxu0 0.0
  %425 = vmatpush2.msra.mxu0 0.0
  %426 = vmatprep.subr.mxu0 0.0
  %427 = vmatpush2.msra.mxu0 0.0
  %428 = vmatprep.subr.mxu0 0.0
  %429 = vmatpush2.msra.mxu0 0.0
  %430 = vmatprep.mubr.f32.mxu0 0.0
  %431 = vmatmul.mubr.f32.gmra.mxu0 %v271
  %v432 = vpop.f32.mrf.mxu0
  %v433 = vadd.f32 %v112, %v432
  %v434 = vpop.f32.mrf.mxu0
  %435 = vmatprep.mubr.f32.mxu0 0.0
  %436 = vmatmul.mubr.f32.gmra.mxu0 %v274
  %v437 = vpop.f32.mrf.mxu0
  %v438 = vadd.f32 %v117, %v437
  %v439 = vpop.f32.mrf.mxu0
  %440 = vmatprep.mubr.f32.mxu0 0.0
  %441 = vmatmul.mubr.f32.gmra.mxu0 %v277
  %v442 = vpop.f32.mrf.mxu0
  %v443 = vadd.f32 %v122, %v442
  %v444 = vpop.f32.mrf.mxu0
  %445 = vmatprep.mubr.f32.mxu0 0.0
  %446 = vmatmul.mubr.f32.gmra.mxu0 %v280
  %v447 = vpop.f32.mrf.mxu0
  %v448 = vadd.f32 %v127, %v447
  %v449 = vpop.f32.mrf.mxu0
  %450 = vmatprep.mubr.f32.mxu0 0.0
  %451 = vmatmul.mubr.f32.gmra.mxu0 %v283
  %v452 = vpop.f32.mrf.mxu0
  %v453 = vadd.f32 %v132, %v452
  %v454 = vpop.f32.mrf.mxu0
  %455 = vmatprep.mubr.f32.mxu0 0.0
  %456 = vmatmul.mubr.f32.gmra.mxu0 %v286
  %v457 = vpop.f32.mrf.mxu0
  %v458 = vadd.f32 %v137, %v457
  %v459 = vpop.f32.mrf.mxu0
  %460 = vmatprep.mubr.f32.mxu0 0.0
  %461 = vmatmul.mubr.f32.gmra.mxu0 %v289
  %v462 = vpop.f32.mrf.mxu0
  %v463 = vadd.f32 %v142, %v462
  %v464 = vpop.f32.mrf.mxu0
  %465 = vmatprep.mubr.f32.mxu0 0.0
  %466 = vmatmul.mubr.f32.gmra.mxu0 %v292
  %v467 = vpop.f32.mrf.mxu0
  %v468 = vadd.f32 %v147, %v467
  %v469 = vpop.f32.mrf.mxu0
  %470 = vmatprep.mubr.f32.mxu0 0.0
  %471 = vmatmul.mubr.f32.gmra.mxu0 %v295
  %v472 = vpop.f32.mrf.mxu0
  %v473 = vadd.f32 %v152, %v472
  %v474 = vpop.f32.mrf.mxu0
  %475 = vmatprep.mubr.f32.mxu0 0.0
  %476 = vmatmul.mubr.f32.gmra.mxu0 %v298
  %v477 = vpop.f32.mrf.mxu0
  %v478 = vadd.f32 %v157, %v477
  %v479 = vpop.f32.mrf.mxu0
  %480 = vmatprep.mubr.f32.mxu0 0.0
  %481 = vmatmul.mubr.f32.gmra.mxu0 %v301
  %v482 = vpop.f32.mrf.mxu0
  %v483 = vadd.f32 %v162, %v482
  %v484 = vpop.f32.mrf.mxu0
  %485 = vmatprep.mubr.f32.mxu0 0.0
  %486 = vmatmul.mubr.f32.gmra.mxu0 %v304
  %v487 = vpop.f32.mrf.mxu0
  %v488 = vadd.f32 %v167, %v487
  %v489 = vpop.f32.mrf.mxu0
  %490 = vmatprep.mubr.f32.mxu0 0.0
  %491 = vmatmul.mubr.f32.gmra.mxu0 %v307
  %v492 = vpop.f32.mrf.mxu0
  %v493 = vadd.f32 %v172, %v492
  %v494 = vpop.f32.mrf.mxu0
  %495 = vmatprep.mubr.f32.mxu0 0.0
  %496 = vmatmul.mubr.f32.gmra.mxu0 %v310
  %v497 = vpop.f32.mrf.mxu0
  %v498 = vadd.f32 %v177, %v497
  %v499 = vpop.f32.mrf.mxu0
  %500 = vmatprep.mubr.f32.mxu0 0.0
  %501 = vmatmul.mubr.f32.gmra.mxu0 %v313
  %v502 = vpop.f32.mrf.mxu0
  %v503 = vadd.f32 %v182, %v502
  %v504 = vpop.f32.mrf.mxu0
  %505 = vmatprep.mubr.f32.mxu0 0.0
  %506 = vmatmul.mubr.f32.gmra.mxu0 %v316
  %v507 = vpop.f32.mrf.mxu0
  %v508 = vadd.f32 %v187, %v507
  %v509 = vpop.f32.mrf.mxu0
  %510 = vmatprep.mubr.f32.mxu0 0.0
  %511 = vmatmul.mubr.f32.gmra.mxu0 %v319
  %v512 = vpop.f32.mrf.mxu0
  %v513 = vadd.f32 %v192, %v512
  %v514 = vpop.f32.mrf.mxu0
  %515 = vmatprep.mubr.f32.mxu0 0.0
  %516 = vmatmul.mubr.f32.gmra.mxu0 %v322
  %v517 = vpop.f32.mrf.mxu0
  %v518 = vadd.f32 %v197, %v517
  %v519 = vpop.f32.mrf.mxu0
  %520 = vmatprep.mubr.f32.mxu0 0.0
  %521 = vmatmul.mubr.f32.gmra.mxu0 %v325
  %v522 = vpop.f32.mrf.mxu0
  %v523 = vadd.f32 %v202, %v522
  %v524 = vpop.f32.mrf.mxu0
  %525 = vmatprep.mubr.f32.mxu0 0.0
  %526 = vmatmul.mubr.f32.gmra.mxu0 %v328
  %v527 = vpop.f32.mrf.mxu0
  %v528 = vadd.f32 %v207, %v527
  %v529 = vpop.f32.mrf.mxu0
  %530 = vmatprep.mubr.f32.mxu0 0.0
  %531 = vmatmul.mubr.f32.gmra.mxu0 %v331
  %v532 = vpop.f32.mrf.mxu0
  %v533 = vadd.f32 %v212, %v532
  %v534 = vpop.f32.mrf.mxu0
  %535 = vmatprep.mubr.f32.mxu0 0.0
  %536 = vmatmul.mubr.f32.gmra.mxu0 %v334
  %v537 = vpop.f32.mrf.mxu0
  %v538 = vadd.f32 %v217, %v537
  %v539 = vpop.f32.mrf.mxu0
  %540 = vmatprep.mubr.f32.mxu0 0.0
  %541 = vmatmul.mubr.f32.gmra.mxu0 %v337
  %v542 = vpop.f32.mrf.mxu0
  %v543 = vadd.f32 %v222, %v542
  %v544 = vpop.f32.mrf.mxu0
  %545 = vmatprep.mubr.f32.mxu0 0.0
  %546 = vmatmul.mubr.f32.gmra.mxu0 %v340
  %v547 = vpop.f32.mrf.mxu0
  %v548 = vadd.f32 %v227, %v547
  %v549 = vpop.f32.mrf.mxu0
  %550 = vmatprep.mubr.f32.mxu0 0.0
  %551 = vmatmul.mubr.f32.gmra.mxu0 %v343
  %v552 = vpop.f32.mrf.mxu0
  %v553 = vadd.f32 %v232, %v552
  %v554 = vpop.f32.mrf.mxu0
  %555 = vmatprep.mubr.f32.mxu0 0.0
  %556 = vmatmul.mubr.f32.gmra.mxu0 %v346
  %v557 = vpop.f32.mrf.mxu0
  %v558 = vadd.f32 %v237, %v557
  %v559 = vpop.f32.mrf.mxu0
  %560 = vmatprep.mubr.f32.mxu0 0.0
  %561 = vmatmul.mubr.f32.gmra.mxu0 %v349
  %v562 = vpop.f32.mrf.mxu0
  %v563 = vadd.f32 %v242, %v562
  %v564 = vpop.f32.mrf.mxu0
  %565 = vmatprep.mubr.f32.mxu0 0.0
  %566 = vmatmul.mubr.f32.gmra.mxu0 %v352
  %v567 = vpop.f32.mrf.mxu0
  %v568 = vadd.f32 %v247, %v567
  %v569 = vpop.f32.mrf.mxu0
  %570 = vmatprep.mubr.f32.mxu0 0.0
  %571 = vmatmul.mubr.f32.gmra.mxu0 %v355
  %v572 = vpop.f32.mrf.mxu0
  %v573 = vadd.f32 %v252, %v572
  %v574 = vpop.f32.mrf.mxu0
  %575 = vmatprep.mubr.f32.mxu0 0.0
  %576 = vmatmul.mubr.f32.gmra.mxu0 %v358
  %v577 = vpop.f32.mrf.mxu0
  %v578 = vadd.f32 %v257, %v577
  %v579 = vpop.f32.mrf.mxu0
  %580 = vmatprep.mubr.f32.mxu0 0.0
  %581 = vmatmul.mubr.f32.gmra.mxu0 %v361
  %v582 = vpop.f32.mrf.mxu0
  %v583 = vadd.f32 %v262, %v582
  %v584 = vpop.f32.mrf.mxu0
  %585 = vmatprep.mubr.f32.mxu0 0.0
  %586 = vmatmul.mubr.f32.gmra.mxu0 %v364
  %v587 = vpop.f32.mrf.mxu0
  %v588 = vadd.f32 %v267, %v587
  %v589 = vpop.f32.mrf.mxu0
  %590 = vdwg.mxu0
  %v591 = vmax.f32 %v433, 0.0
  %v592 = vmax.f32 %v438, 0.0
  %v593 = vmax.f32 %v443, 0.0
  %v594 = vmax.f32 %v448, 0.0
  %v595 = vmax.f32 %v453, 0.0
  %v596 = vmax.f32 %v458, 0.0
  %v597 = vmax.f32 %v463, 0.0
  %v598 = vmax.f32 %v468, 0.0
  %v599 = vmax.f32 %v473, 0.0
  %v600 = vmax.f32 %v478, 0.0
  %v601 = vmax.f32 %v483, 0.0
  %v602 = vmax.f32 %v488, 0.0
  %v603 = vmax.f32 %v493, 0.0
  %v604 = vmax.f32 %v498, 0.0
  %v605 = vmax.f32 %v503, 0.0
  %v606 = vmax.f32 %v508, 0.0
  %v607 = vmax.f32 %v513, 0.0
  %v608 = vmax.f32 %v518, 0.0
  %v609 = vmax.f32 %v523, 0.0
  %v610 = vmax.f32 %v528, 0.0
  %v611 = vmax.f32 %v533, 0.0
  %v612 = vmax.f32 %v538, 0.0
  %v613 = vmax.f32 %v543, 0.0
  %v614 = vmax.f32 %v548, 0.0
  %v615 = vmax.f32 %v553, 0.0
  %v616 = vmax.f32 %v558, 0.0
  %v617 = vmax.f32 %v563, 0.0
  %v618 = vmax.f32 %v568, 0.0
  %v619 = vmax.f32 %v573, 0.0
  %v620 = vmax.f32 %v578, 0.0
  %v621 = vmax.f32 %v583, 0.0
  %v622 = vmax.f32 %v588, 0.0
  %v623 = vld [vmem:[%s3] sm:$0xff]
  %v624 = vld [vmem:[%s3 + $0x8] sm:$0xff]
  %v625 = vld [vmem:[%s3 + $0x10] sm:$0xff]
  %v626 = vld [vmem:[%s3 + $0x18] sm:$0xff]
  %v627 = vld [vmem:[%s3 + $0x20] sm:$0xff]
  %v628 = vld [vmem:[%s3 + $0x28] sm:$0xff]
  %v629 = vld [vmem:[%s3 + $0x30] sm:$0xff]
  %v630 = vld [vmem:[%s3 + $0x38] sm:$0xff]
  %v631 = vld [vmem:[%s4] sm:$0xff]
  %v632 = vld [vmem:[%s4 + $0x8] sm:$0xff]
  %v633 = vld [vmem:[%s4 + $0x10] sm:$0xff]
  %v634 = vld [vmem:[%s4 + $0x18] sm:$0xff]
  %636 = vset.pattern.permute.xlu0 0
  %637 = vperm.xlu0 %636, %v631
  %v638 = vpop.permute.xlu0 %637
  %641 = vset.pattern.permute.xlu0 0
  %642 = vperm.xlu0 %641, %v632
  %v643 = vpop.permute.xlu0 %642
  %646 = vset.pattern.permute.xlu0 0
  %647 = vperm.xlu0 %646, %v633
  %v648 = vpop.permute.xlu0 %647
  %651 = vset.pattern.permute.xlu0 0
  %652 = vperm.xlu0 %651, %v634
  %v653 = vpop.permute.xlu0 %652
  %655 = vmatprep.subr.mxu0 0.0
  %656 = vmatpush1.msra.mxu0 %v606
  %657 = vmatprep.subr.mxu0 0.0
  %658 = vmatpush1.msra.mxu0 %v605
  %659 = vmatprep.subr.mxu0 0.0
  %660 = vmatpush1.msra.mxu0 %v604
  %661 = vmatprep.subr.mxu0 0.0
  %662 = vmatpush1.msra.mxu0 %v603
  %663 = vmatprep.subr.mxu0 0.0
  %664 = vmatpush1.msra.mxu0 %v602
  %665 = vmatprep.subr.mxu0 0.0
  %666 = vmatpush1.msra.mxu0 %v601
  %667 = vmatprep.subr.mxu0 0.0
  %668 = vmatpush1.msra.mxu0 %v600
  %669 = vmatprep.subr.mxu0 0.0
  %670 = vmatpush1.msra.mxu0 %v599
  %671 = vmatprep.subr.mxu0 0.0
  %672 = vmatpush1.msra.mxu0 %v598
  %673 = vmatprep.subr.mxu0 0.0
  %674 = vmatpush1.msra.mxu0 %v597
  %675 = vmatprep.subr.mxu0 0.0
  %676 = vmatpush1.msra.mxu0 %v596
  %677 = vmatprep.subr.mxu0 0.0
  %678 = vmatpush1.msra.mxu0 %v595
  %679 = vmatprep.subr.mxu0 0.0
  %680 = vmatpush1.msra.mxu0 %v594
  %681 = vmatprep.subr.mxu0 0.0
  %682 = vmatpush1.msra.mxu0 %v593
  %683 = vmatprep.subr.mxu0 0.0
  %684 = vmatpush1.msra.mxu0 %v592
  %685 = vmatprep.subr.mxu0 0.0
  %686 = vmatpush1.msra.mxu0 %v591
  %687 = vmatprep.subr.mxu0 0.0
  %688 = vmatpush2.msra.mxu0 %v622
  %689 = vmatprep.subr.mxu0 0.0
  %690 = vmatpush2.msra.mxu0 %v621
  %691 = vmatprep.subr.mxu0 0.0
  %692 = vmatpush2.msra.mxu0 %v620
  %693 = vmatprep.subr.mxu0 0.0
  %694 = vmatpush2.msra.mxu0 %v619
  %695 = vmatprep.subr.mxu0 0.0
  %696 = vmatpush2.msra.mxu0 %v618
  %697 = vmatprep.subr.mxu0 0.0
  %698 = vmatpush2.msra.mxu0 %v617
  %699 = vmatprep.subr.mxu0 0.0
  %700 = vmatpush2.msra.mxu0 %v616
  %701 = vmatprep.subr.mxu0 0.0
  %702 = vmatpush2.msra.mxu0 %v615
  %703 = vmatprep.subr.mxu0 0.0
  %704 = vmatpush2.msra.mxu0 %v614
  %705 = vmatprep.subr.mxu0 0.0
  %706 = vmatpush2.msra.mxu0 %v613
  %707 = vmatprep.subr.mxu0 0.0
  %708 = vmatpush2.msra.mxu0 %v612
  %709 = vmatprep.subr.mxu0 0.0
  %710 = vmatpush2.msra.mxu0 %v611
  %711 = vmatprep.subr.mxu0 0.0
  %712 = vmatpush2.msra.mxu0 %v610
  %713 = vmatprep.subr.mxu0 0.0
  %714 = vmatpush2.msra.mxu0 %v609
  %715 = vmatprep.subr.mxu0 0.0
  %716 = vmatpush2.msra.mxu0 %v608
  %717 = vmatprep.subr.mxu0 0.0
  %718 = vmatpush2.msra.mxu0 %v607
  %719 = vmatprep.mubr.f32.mxu0 %v624
  %720 = vmatmul.mubr.f32.gmra.mxu0 %v623
  %v721 = vpop.f32.mrf.mxu0
  %v722 = vadd.f32 %v638, %v721
  %v723 = vpop.f32.mrf.mxu0
  %724 = vmatprep.mubr.f32.mxu0 %v626
  %725 = vmatmul.mubr.f32.gmra.mxu0 %v625
  %v726 = vpop.f32.mrf.mxu0
  %v727 = vadd.f32 %v643, %v726
  %v728 = vpop.f32.mrf.mxu0
  %729 = vmatprep.mubr.f32.mxu0 %v628
  %730 = vmatmul.mubr.f32.gmra.mxu0 %v627
  %v731 = vpop.f32.mrf.mxu0
  %v732 = vadd.f32 %v648, %v731
  %v733 = vpop.f32.mrf.mxu0
  %734 = vmatprep.mubr.f32.mxu0 %v630
  %735 = vmatmul.mubr.f32.gmra.mxu0 %v629
  %v736 = vpop.f32.mrf.mxu0
  %v737 = vadd.f32 %v653, %v736
  %v738 = vpop.f32.mrf.mxu0
  %739 = vdwg.mxu0
  %v740 = vld [vmem:[%s5] sm:$0xff]
  %v741 = vld [vmem:[%s5 + $0x8] sm:$0xff]
  %v742 = vld [vmem:[%s5 + $0x10] sm:$0xff]
  %v743 = vld [vmem:[%s5 + $0x18] sm:$0xff]
  %v744 = vld [vmem:[%s6] sm:$0xff]
  %v745 = vld [vmem:[%s6 + $0x8] sm:$0xff]
  %v746 = vld [vmem:[%s6 + $0x10] sm:$0xff]
  %v747 = vld [vmem:[%s6 + $0x18] sm:$0xff]
  %749 = vset.pattern.permute.xlu0 0
  %750 = vperm.xlu0 %749, %v740
  %v751 = vpop.permute.xlu0 %750
  %754 = vset.pattern.permute.xlu0 0
  %755 = vperm.xlu0 %754, %v741
  %v756 = vpop.permute.xlu0 %755
  %759 = vset.pattern.permute.xlu0 0
  %760 = vperm.xlu0 %759, %v742
  %v761 = vpop.permute.xlu0 %760
  %764 = vset.pattern.permute.xlu0 0
  %765 = vperm.xlu0 %764, %v743
  %v766 = vpop.permute.xlu0 %765
  %v768 = vadd.f32 %v722, %v751
  %v769 = vadd.f32 %v727, %v756
  %v770 = vadd.f32 %v732, %v761
  %v771 = vadd.f32 %v737, %v766
  %v773 = vsel %vm269, %v744, 0
  %v776 = vsel %vm269, %v745, 0
  %v779 = vsel %vm269, %v746, 0
  %v782 = vsel %vm269, %v747, 0
  %784 = vmatprep.subr.mxu0 0.0
  %785 = vmatpush1.msra.mxu0 0.0
  %786 = vmatprep.subr.mxu0 0.0
  %787 = vmatpush1.msra.mxu0 0.0
  %788 = vmatprep.subr.mxu0 0.0
  %789 = vmatpush1.msra.mxu0 0.0
  %790 = vmatprep.subr.mxu0 0.0
  %791 = vmatpush1.msra.mxu0 0.0
  %792 = vmatprep.subr.mxu0 0.0
  %793 = vmatpush1.msra.mxu0 0.0
  %794 = vmatprep.subr.mxu0 0.0
  %795 = vmatpush1.msra.mxu0 0.0
  %796 = vmatprep.subr.mxu0 0.0
  %797 = vmatpush1.msra.mxu0 0.0
  %798 = vmatprep.subr.mxu0 0.0
  %799 = vmatpush1.msra.mxu0 0.0
  %800 = vmatprep.subr.mxu0 0.0
  %801 = vmatpush1.msra.mxu0 0.0
  %802 = vmatprep.subr.mxu0 0.0
  %803 = vmatpush1.msra.mxu0 0.0
  %804 = vmatprep.subr.mxu0 0.0
  %805 = vmatpush1.msra.mxu0 0.0
  %806 = vmatprep.subr.mxu0 0.0
  %807 = vmatpush1.msra.mxu0 0.0
  %808 = vmatprep.subr.mxu0 0.0
  %809 = vmatpush1.msra.mxu0 %v771
  %810 = vmatprep.subr.mxu0 0.0
  %811 = vmatpush1.msra.mxu0 %v770
  %812 = vmatprep.subr.mxu0 0.0
  %813 = vmatpush1.msra.mxu0 %v769
  %814 = vmatprep.subr.mxu0 0.0
  %815 = vmatpush1.msra.mxu0 %v768
  %816 = vmatprep.subr.mxu0 0.0
  %817 = vmatpush2.msra.mxu0 0.0
  %818 = vmatprep.subr.mxu0 0.0
  %819 = vmatpush2.msra.mxu0 0.0
  %820 = vmatprep.subr.mxu0 0.0
  %821 = vmatpush2.msra.mxu0 0.0
  %822 = vmatprep.subr.mxu0 0.0
  %823 = vmatpush2.msra.mxu0 0.0
  %824 = vmatprep.subr.mxu0 0.0
  %825 = vmatpush2.msra.mxu0 0.0
  %826 = vmatprep.subr.mxu0 0.0
  %827 = vmatpush2.msra.mxu0 0.0
  %828 = vmatprep.subr.mxu0 0.0
  %829 = vmatpush2.msra.mxu0 0.0
  %830 = vmatprep.subr.mxu0 0.0
  %831 = vmatpush2.msra.mxu0 0.0
  %832 = vmatprep.subr.mxu0 0.0
  %833 = vmatpush2.msra.mxu0 0.0
  %834 = vmatprep.subr.mxu0 0.0
  %835 = vmatpush2.msra.mxu0 0.0
  %836 = vmatprep.subr.mxu0 0.0
  %837 = vmatpush2.msra.mxu0 0.0
  %838 = vmatprep.subr.mxu0 0.0
  %839 = vmatpush2.msra.mxu0 0.0
  %840 = vmatprep.subr.mxu0 0.0
  %841 = vmatpush2.msra.mxu0 0.0
  %842 = vmatprep.subr.mxu0 0.0
  %843 = vmatpush2.msra.mxu0 0.0
  %844 = vmatprep.subr.mxu0 0.0
  %845 = vmatpush2.msra.mxu0 0.0
  %846 = vmatprep.subr.mxu0 0.0
  %847 = vmatpush2.msra.mxu0 0.0
  %848 = vmatprep.mubr.f32.mxu0 0.0
  %849 = vmatmul.mubr.f32.gmra.mxu0 %v773
  %v850 = vpop.f32.mrf.mxu0
  %v851 = vadd.f32 0.0, %v850
  %v852 = vpop.f32.mrf.mxu0
  %853 = vmatprep.mubr.f32.mxu0 0.0
  %854 = vmatmul.mubr.f32.gmra.mxu0 %v776
  %v855 = vpop.f32.mrf.mxu0
  %v856 = vadd.f32 0.0, %v855
  %v857 = vpop.f32.mrf.mxu0
  %858 = vmatprep.mubr.f32.mxu0 0.0
  %859 = vmatmul.mubr.f32.gmra.mxu0 %v779
  %v860 = vpop.f32.mrf.mxu0
  %v861 = vadd.f32 0.0, %v860
  %v862 = vpop.f32.mrf.mxu0
  %863 = vmatprep.mubr.f32.mxu0 0.0
  %864 = vmatmul.mubr.f32.gmra.mxu0 %v782
  %v865 = vpop.f32.mrf.mxu0
  %v866 = vadd.f32 0.0, %v865
  %v867 = vpop.f32.mrf.mxu0
  %868 = vdwg.mxu0
  %v869 = vsub.f32 %v851, %v751
  %v870 = vsub.f32 %v856, %v756
  %v871 = vsub.f32 %v861, %v761
  %v872 = vsub.f32 %v866, %v766
  %v873 = vld [vmem:[%s7] sm:$0xff]
  %v874 = vld [vmem:[%s7 + $0x8] sm:$0xff]
  %v875 = vld [vmem:[%s7 + $0x10] sm:$0xff]
  %v876 = vld [vmem:[%s7 + $0x18] sm:$0xff]
  %v877 = vadd.f32 %v869, %v751
  %v878 = vadd.f32 %v870, %v756
  %v879 = vadd.f32 %v871, %v761
  %v880 = vadd.f32 %v872, %v766
  %v882 = vsel %vm269, %v873, 0
  %v885 = vsel %vm269, %v874, 0
  %v888 = vsel %vm269, %v875, 0
  %v891 = vsel %vm269, %v876, 0
  %893 = vmatprep.subr.mxu0 0.0
  %894 = vmatpush1.msra.mxu0 0.0
  %895 = vmatprep.subr.mxu0 0.0
  %896 = vmatpush1.msra.mxu0 0.0
  %897 = vmatprep.subr.mxu0 0.0
  %898 = vmatpush1.msra.mxu0 0.0
  %899 = vmatprep.subr.mxu0 0.0
  %900 = vmatpush1.msra.mxu0 0.0
  %901 = vmatprep.subr.mxu0 0.0
  %902 = vmatpush1.msra.mxu0 0.0
  %903 = vmatprep.subr.mxu0 0.0
  %904 = vmatpush1.msra.mxu0 0.0
  %905 = vmatprep.subr.mxu0 0.0
  %906 = vmatpush1.msra.mxu0 0.0
  %907 = vmatprep.subr.mxu0 0.0
  %908 = vmatpush1.msra.mxu0 0.0
  %909 = vmatprep.subr.mxu0 0.0
  %910 = vmatpush1.msra.mxu0 0.0
  %911 = vmatprep.subr.mxu0 0.0
  %912 = vmatpush1.msra.mxu0 0.0
  %913 = vmatprep.subr.mxu0 0.0
  %914 = vmatpush1.msra.mxu0 0.0
  %915 = vmatprep.subr.mxu0 0.0
  %916 = vmatpush1.msra.mxu0 0.0
  %917 = vmatprep.subr.mxu0 0.0
  %918 = vmatpush1.msra.mxu0 %v880
  %919 = vmatprep.subr.mxu0 0.0
  %920 = vmatpush1.msra.mxu0 %v879
  %921 = vmatprep.subr.mxu0 0.0
  %922 = vmatpush1.msra.mxu0 %v878
  %923 = vmatprep.subr.mxu0 0.0
  %924 = vmatpush1.msra.mxu0 %v877
  %925 = vmatprep.subr.mxu0 0.0
  %926 = vmatpush2.msra.mxu0 0.0
  %927 = vmatprep.subr.mxu0 0.0
  %928 = vmatpush2.msra.mxu0 0.0
  %929 = vmatprep.subr.mxu0 0.0
  %930 = vmatpush2.msra.mxu0 0.0
  %931 = vmatprep.subr.mxu0 0.0
  %932 = vmatpush2.msra.mxu0 0.0
  %933 = vmatprep.subr.mxu0 0.0
  %934 = vmatpush2.msra.mxu0 0.0
  %935 = vmatprep.subr.mxu0 0.0
  %936 = vmatpush2.msra.mxu0 0.0
  %937 = vmatprep.subr.mxu0 0.0
  %938 = vmatpush2.msra.mxu0 0.0
  %939 = vmatprep.subr.mxu0 0.0
  %940 = vmatpush2.msra.mxu0 0.0
  %941 = vmatprep.subr.mxu0 0.0
  %942 = vmatpush2.msra.mxu0 0.0
  %943 = vmatprep.subr.mxu0 0.0
  %944 = vmatpush2.msra.mxu0 0.0
  %945 = vmatprep.subr.mxu0 0.0
  %946 = vmatpush2.msra.mxu0 0.0
  %947 = vmatprep.subr.mxu0 0.0
  %948 = vmatpush2.msra.mxu0 0.0
  %949 = vmatprep.subr.mxu0 0.0
  %950 = vmatpush2.msra.mxu0 0.0
  %951 = vmatprep.subr.mxu0 0.0
  %952 = vmatpush2.msra.mxu0 0.0
  %953 = vmatprep.subr.mxu0 0.0
  %954 = vmatpush2.msra.mxu0 0.0
  %955 = vmatprep.subr.mxu0 0.0
  %956 = vmatpush2.msra.mxu0 0.0
  %957 = vmatprep.mubr.f32.mxu0 0.0
  %958 = vmatmul.mubr.f32.gmra.mxu0 %v882
  %v959 = vpop.f32.mrf.mxu0
  %v960 = vadd.f32 0.0, %v959
  %v961 = vpop.f32.mrf.mxu0
  %962 = vmatprep.mubr.f32.mxu0 0.0
  %963 = vmatmul.mubr.f32.gmra.mxu0 %v885
  %v964 = vpop.f32.mrf.mxu0
  %v965 = vadd.f32 0.0, %v964
  %v966 = vpop.f32.mrf.mxu0
  %967 = vmatprep.mubr.f32.mxu0 0.0
  %968 = vmatmul.mubr.f32.gmra.mxu0 %v888
  %v969 = vpop.f32.mrf.mxu0
  %v970 = vadd.f32 0.0, %v969
  %v971 = vpop.f32.mrf.mxu0
  %972 = vmatprep.mubr.f32.mxu0 0.0
  %973 = vmatmul.mubr.f32.gmra.mxu0 %v891
  %v974 = vpop.f32.mrf.mxu0
  %v975 = vadd.f32 0.0, %v974
  %v976 = vpop.f32.mrf.mxu0
  %977 = vdwg.mxu0
  %v978 = vsub.f32 %v960, %v751
  %v979 = vsub.f32 %v965, %v756
  %v980 = vsub.f32 %v970, %v761
  %v981 = vsub.f32 %v975, %v766
  %v982 = vld [vmem:[%s8] sm:$0xff]
  %v983 = vld [vmem:[%s8 + $0x8] sm:$0xff]
  %v984 = vld [vmem:[%s8 + $0x10] sm:$0xff]
  %v985 = vld [vmem:[%s8 + $0x18] sm:$0xff]
  %v986 = vld [vmem:[%s8 + $0x20] sm:$0xff]
  %v987 = vld [vmem:[%s8 + $0x28] sm:$0xff]
  %v988 = vld [vmem:[%s8 + $0x30] sm:$0xff]
  %v989 = vld [vmem:[%s8 + $0x38] sm:$0xff]
  %v990 = vld [vmem:[%s8 + $0x40] sm:$0xff]
  %v991 = vld [vmem:[%s8 + $0x48] sm:$0xff]
  %v992 = vld [vmem:[%s8 + $0x50] sm:$0xff]
  %v993 = vld [vmem:[%s8 + $0x58] sm:$0xff]
  %v994 = vld [vmem:[%s8 + $0x60] sm:$0xff]
  %v995 = vld [vmem:[%s8 + $0x68] sm:$0xff]
  %v996 = vld [vmem:[%s8 + $0x70] sm:$0xff]
  %v997 = vld [vmem:[%s8 + $0x78] sm:$0xff]
  %v998 = vld [vmem:[%s8 + $0x80] sm:$0xff]
  %v999 = vld [vmem:[%s8 + $0x88] sm:$0xff]
  %v1000 = vld [vmem:[%s8 + $0x90] sm:$0xff]
  %v1001 = vld [vmem:[%s8 + $0x98] sm:$0xff]
  %v1002 = vld [vmem:[%s8 + $0xa0] sm:$0xff]
  %v1003 = vld [vmem:[%s8 + $0xa8] sm:$0xff]
  %v1004 = vld [vmem:[%s8 + $0xb0] sm:$0xff]
  %v1005 = vld [vmem:[%s8 + $0xb8] sm:$0xff]
  %v1006 = vld [vmem:[%s8 + $0xc0] sm:$0xff]
  %v1007 = vld [vmem:[%s8 + $0xc8] sm:$0xff]
  %v1008 = vld [vmem:[%s8 + $0xd0] sm:$0xff]
  %v1009 = vld [vmem:[%s8 + $0xd8] sm:$0xff]
  %v1010 = vld [vmem:[%s8 + $0xe0] sm:$0xff]
  %v1011 = vld [vmem:[%s8 + $0xe8] sm:$0xff]
  %v1012 = vld [vmem:[%s8 + $0xf0] sm:$0xff]
  %v1013 = vld [vmem:[%s8 + $0xf8] sm:$0xff]
  %v1014 = vld [vmem:[%s9] sm:$0xff]
  %v1015 = vld [vmem:[%s9 + $0x8] sm:$0xff]
  %v1016 = vld [vmem:[%s9 + $0x10] sm:$0xff]
  %v1017 = vld [vmem:[%s9 + $0x18] sm:$0xff]
  %v1018 = vld [vmem:[%s9 + $0x20] sm:$0xff]
  %v1019 = vld [vmem:[%s9 + $0x28] sm:$0xff]
  %v1020 = vld [vmem:[%s9 + $0x30] sm:$0xff]
  %v1021 = vld [vmem:[%s9 + $0x38] sm:$0xff]
  %v1022 = vld [vmem:[%s9 + $0x40] sm:$0xff]
  %v1023 = vld [vmem:[%s9 + $0x48] sm:$0xff]
  %v1024 = vld [vmem:[%s9 + $0x50] sm:$0xff]
  %v1025 = vld [vmem:[%s9 + $0x58] sm:$0xff]
  %v1026 = vld [vmem:[%s9 + $0x60] sm:$0xff]
  %v1027 = vld [vmem:[%s9 + $0x68] sm:$0xff]
  %v1028 = vld [vmem:[%s9 + $0x70] sm:$0xff]
  %v1029 = vld [vmem:[%s9 + $0x78] sm:$0xff]
  %v1030 = vld [vmem:[%s9 + $0x80] sm:$0xff]
  %v1031 = vld [vmem:[%s9 + $0x88] sm:$0xff]
  %v1032 = vld [vmem:[%s9 + $0x90] sm:$0xff]
  %v1033 = vld [vmem:[%s9 + $0x98] sm:$0xff]
  %v1034 = vld [vmem:[%s9 + $0xa0] sm:$0xff]
  %v1035 = vld [vmem:[%s9 + $0xa8] sm:$0xff]
  %v1036 = vld [vmem:[%s9 + $0xb0] sm:$0xff]
  %v1037 = vld [vmem:[%s9 + $0xb8] sm:$0xff]
  %v1038 = vld [vmem:[%s9 + $0xc0] sm:$0xff]
  %v1039 = vld [vmem:[%s9 + $0xc8] sm:$0xff]
  %v1040 = vld [vmem:[%s9 + $0xd0] sm:$0xff]
  %v1041 = vld [vmem:[%s9 + $0xd8] sm:$0xff]
  %v1042 = vld [vmem:[%s9 + $0xe0] sm:$0xff]
  %v1043 = vld [vmem:[%s9 + $0xe8] sm:$0xff]
  %v1044 = vld [vmem:[%s9 + $0xf0] sm:$0xff]
  %v1045 = vld [vmem:[%s9 + $0xf8] sm:$0xff]
  %1047 = vset.pattern.permute.xlu0 0
  %1048 = vperm.xlu0 %1047, %v1014
  %v1049 = vpop.permute.xlu0 %1048
  %1052 = vset.pattern.permute.xlu0 0
  %1053 = vperm.xlu0 %1052, %v1015
  %v1054 = vpop.permute.xlu0 %1053
  %1057 = vset.pattern.permute.xlu0 0
  %1058 = vperm.xlu0 %1057, %v1016
  %v1059 = vpop.permute.xlu0 %1058
  %1062 = vset.pattern.permute.xlu0 0
  %1063 = vperm.xlu0 %1062, %v1017
  %v1064 = vpop.permute.xlu0 %1063
  %1067 = vset.pattern.permute.xlu0 0
  %1068 = vperm.xlu0 %1067, %v1018
  %v1069 = vpop.permute.xlu0 %1068
  %1072 = vset.pattern.permute.xlu0 0
  %1073 = vperm.xlu0 %1072, %v1019
  %v1074 = vpop.permute.xlu0 %1073
  %1077 = vset.pattern.permute.xlu0 0
  %1078 = vperm.xlu0 %1077, %v1020
  %v1079 = vpop.permute.xlu0 %1078
  %1082 = vset.pattern.permute.xlu0 0
  %1083 = vperm.xlu0 %1082, %v1021
  %v1084 = vpop.permute.xlu0 %1083
  %1087 = vset.pattern.permute.xlu0 0
  %1088 = vperm.xlu0 %1087, %v1022
  %v1089 = vpop.permute.xlu0 %1088
  %1092 = vset.pattern.permute.xlu0 0
  %1093 = vperm.xlu0 %1092, %v1023
  %v1094 = vpop.permute.xlu0 %1093
  %1097 = vset.pattern.permute.xlu0 0
  %1098 = vperm.xlu0 %1097, %v1024
  %v1099 = vpop.permute.xlu0 %1098
  %1102 = vset.pattern.permute.xlu0 0
  %1103 = vperm.xlu0 %1102, %v1025
  %v1104 = vpop.permute.xlu0 %1103
  %1107 = vset.pattern.permute.xlu0 0
  %1108 = vperm.xlu0 %1107, %v1026
  %v1109 = vpop.permute.xlu0 %1108
  %1112 = vset.pattern.permute.xlu0 0
  %1113 = vperm.xlu0 %1112, %v1027
  %v1114 = vpop.permute.xlu0 %1113
  %1117 = vset.pattern.permute.xlu0 0
  %1118 = vperm.xlu0 %1117, %v1028
  %v1119 = vpop.permute.xlu0 %1118
  %1122 = vset.pattern.permute.xlu0 0
  %1123 = vperm.xlu0 %1122, %v1029
  %v1124 = vpop.permute.xlu0 %1123
  %1127 = vset.pattern.permute.xlu0 0
  %1128 = vperm.xlu0 %1127, %v1030
  %v1129 = vpop.permute.xlu0 %1128
  %1132 = vset.pattern.permute.xlu0 0
  %1133 = vperm.xlu0 %1132, %v1031
  %v1134 = vpop.permute.xlu0 %1133
  %1137 = vset.pattern.permute.xlu0 0
  %1138 = vperm.xlu0 %1137, %v1032
  %v1139 = vpop.permute.xlu0 %1138
  %1142 = vset.pattern.permute.xlu0 0
  %1143 = vperm.xlu0 %1142, %v1033
  %v1144 = vpop.permute.xlu0 %1143
  %1147 = vset.pattern.permute.xlu0 0
  %1148 = vperm.xlu0 %1147, %v1034
  %v1149 = vpop.permute.xlu0 %1148
  %1152 = vset.pattern.permute.xlu0 0
  %1153 = vperm.xlu0 %1152, %v1035
  %v1154 = vpop.permute.xlu0 %1153
  %1157 = vset.pattern.permute.xlu0 0
  %1158 = vperm.xlu0 %1157, %v1036
  %v1159 = vpop.permute.xlu0 %1158
  %1162 = vset.pattern.permute.xlu0 0
  %1163 = vperm.xlu0 %1162, %v1037
  %v1164 = vpop.permute.xlu0 %1163
  %1167 = vset.pattern.permute.xlu0 0
  %1168 = vperm.xlu0 %1167, %v1038
  %v1169 = vpop.permute.xlu0 %1168
  %1172 = vset.pattern.permute.xlu0 0
  %1173 = vperm.xlu0 %1172, %v1039
  %v1174 = vpop.permute.xlu0 %1173
  %1177 = vset.pattern.permute.xlu0 0
  %1178 = vperm.xlu0 %1177, %v1040
  %v1179 = vpop.permute.xlu0 %1178
  %1182 = vset.pattern.permute.xlu0 0
  %1183 = vperm.xlu0 %1182, %v1041
  %v1184 = vpop.permute.xlu0 %1183
  %1187 = vset.pattern.permute.xlu0 0
  %1188 = vperm.xlu0 %1187, %v1042
  %v1189 = vpop.permute.xlu0 %1188
  %1192 = vset.pattern.permute.xlu0 0
  %1193 = vperm.xlu0 %1192, %v1043
  %v1194 = vpop.permute.xlu0 %1193
  %1197 = vset.pattern.permute.xlu0 0
  %1198 = vperm.xlu0 %1197, %v1044
  %v1199 = vpop.permute.xlu0 %1198
  %1202 = vset.pattern.permute.xlu0 0
  %1203 = vperm.xlu0 %1202, %v1045
  %v1204 = vpop.permute.xlu0 %1203
  %v1207 = vsel %vm269, %v982, 0
  %v1210 = vsel %vm269, %v983, 0
  %v1213 = vsel %vm269, %v984, 0
  %v1216 = vsel %vm269, %v985, 0
  %v1219 = vsel %vm269, %v986, 0
  %v1222 = vsel %vm269, %v987, 0
  %v1225 = vsel %vm269, %v988, 0
  %v1228 = vsel %vm269, %v989, 0
  %v1231 = vsel %vm269, %v990, 0
  %v1234 = vsel %vm269, %v991, 0
  %v1237 = vsel %vm269, %v992, 0
  %v1240 = vsel %vm269, %v993, 0
  %v1243 = vsel %vm269, %v994, 0
  %v1246 = vsel %vm269, %v995, 0
  %v1249 = vsel %vm269, %v996, 0
  %v1252 = vsel %vm269, %v997, 0
  %v1255 = vsel %vm269, %v998, 0
  %v1258 = vsel %vm269, %v999, 0
  %v1261 = vsel %vm269, %v1000, 0
  %v1264 = vsel %vm269, %v1001, 0
  %v1267 = vsel %vm269, %v1002, 0
  %v1270 = vsel %vm269, %v1003, 0
  %v1273 = vsel %vm269, %v1004, 0
  %v1276 = vsel %vm269, %v1005, 0
  %v1279 = vsel %vm269, %v1006, 0
  %v1282 = vsel %vm269, %v1007, 0
  %v1285 = vsel %vm269, %v1008, 0
  %v1288 = vsel %vm269, %v1009, 0
  %v1291 = vsel %vm269, %v1010, 0
  %v1294 = vsel %vm269, %v1011, 0
  %v1297 = vsel %vm269, %v1012, 0
  %v1300 = vsel %vm269, %v1013, 0
  %1302 = vmatprep.subr.mxu0 0.0
  %1303 = vmatpush1.msra.mxu0 0.0
  %1304 = vmatprep.subr.mxu0 0.0
  %1305 = vmatpush1.msra.mxu0 0.0
  %1306 = vmatprep.subr.mxu0 0.0
  %1307 = vmatpush1.msra.mxu0 0.0
  %1308 = vmatprep.subr.mxu0 0.0
  %1309 = vmatpush1.msra.mxu0 0.0
  %1310 = vmatprep.subr.mxu0 0.0
  %1311 = vmatpush1.msra.mxu0 0.0
  %1312 = vmatprep.subr.mxu0 0.0
  %1313 = vmatpush1.msra.mxu0 0.0
  %1314 = vmatprep.subr.mxu0 0.0
  %1315 = vmatpush1.msra.mxu0 0.0
  %1316 = vmatprep.subr.mxu0 0.0
  %1317 = vmatpush1.msra.mxu0 0.0
  %1318 = vmatprep.subr.mxu0 0.0
  %1319 = vmatpush1.msra.mxu0 0.0
  %1320 = vmatprep.subr.mxu0 0.0
  %1321 = vmatpush1.msra.mxu0 0.0
  %1322 = vmatprep.subr.mxu0 0.0
  %1323 = vmatpush1.msra.mxu0 0.0
  %1324 = vmatprep.subr.mxu0 0.0
  %1325 = vmatpush1.msra.mxu0 0.0
  %1326 = vmatprep.subr.mxu0 0.0
  %1327 = vmatpush1.msra.mxu0 %v981
  %1328 = vmatprep.subr.mxu0 0.0
  %1329 = vmatpush1.msra.mxu0 %v980
  %1330 = vmatprep.subr.mxu0 0.0
  %1331 = vmatpush1.msra.mxu0 %v979
  %1332 = vmatprep.subr.mxu0 0.0
  %1333 = vmatpush1.msra.mxu0 %v978
  %1334 = vmatprep.subr.mxu0 0.0
  %1335 = vmatpush2.msra.mxu0 0.0
  %1336 = vmatprep.subr.mxu0 0.0
  %1337 = vmatpush2.msra.mxu0 0.0
  %1338 = vmatprep.subr.mxu0 0.0
  %1339 = vmatpush2.msra.mxu0 0.0
  %1340 = vmatprep.subr.mxu0 0.0
  %1341 = vmatpush2.msra.mxu0 0.0
  %1342 = vmatprep.subr.mxu0 0.0
  %1343 = vmatpush2.msra.mxu0 0.0
  %1344 = vmatprep.subr.mxu0 0.0
  %1345 = vmatpush2.msra.mxu0 0.0
  %1346 = vmatprep.subr.mxu0 0.0
  %1347 = vmatpush2.msra.mxu0 0.0
  %1348 = vmatprep.subr.mxu0 0.0
  %1349 = vmatpush2.msra.mxu0 0.0
  %1350 = vmatprep.subr.mxu0 0.0
  %1351 = vmatpush2.msra.mxu0 0.0
  %1352 = vmatprep.subr.mxu0 0.0
  %1353 = vmatpush2.msra.mxu0 0.0
  %1354 = vmatprep.subr.mxu0 0.0
  %1355 = vmatpush2.msra.mxu0 0.0
  %1356 = vmatprep.subr.mxu0 0.0
  %1357 = vmatpush2.msra.mxu0 0.0
  %1358 = vmatprep.subr.mxu0 0.0
  %1359 = vmatpush2.msra.mxu0 0.0
  %1360 = vmatprep.subr.mxu0 0.0
  %1361 = vmatpush2.msra.mxu0 0.0
  %1362 = vmatprep.subr.mxu0 0.0
  %1363 = vmatpush2.msra.mxu0 0.0
  %1364 = vmatprep.subr.mxu0 0.0
  %1365 = vmatpush2.msra.mxu0 0.0
  %1366 = vmatprep.mubr.f32.mxu0 0.0
  %1367 = vmatmul.mubr.f32.gmra.mxu0 %v1207
  %v1368 = vpop.f32.mrf.mxu0
  %v1369 = vadd.f32 %v1049, %v1368
  %v1370 = vpop.f32.mrf.mxu0
  %1371 = vmatprep.mubr.f32.mxu0 0.0
  %1372 = vmatmul.mubr.f32.gmra.mxu0 %v1210
  %v1373 = vpop.f32.mrf.mxu0
  %v1374 = vadd.f32 %v1054, %v1373
  %v1375 = vpop.f32.mrf.mxu0
  %1376 = vmatprep.mubr.f32.mxu0 0.0
  %1377 = vmatmul.mubr.f32.gmra.mxu0 %v1213
  %v1378 = vpop.f32.mrf.mxu0
  %v1379 = vadd.f32 %v1059, %v1378
  %v1380 = vpop.f32.mrf.mxu0
  %1381 = vmatprep.mubr.f32.mxu0 0.0
  %1382 = vmatmul.mubr.f32.gmra.mxu0 %v1216
  %v1383 = vpop.f32.mrf.mxu0
  %v1384 = vadd.f32 %v1064, %v1383
  %v1385 = vpop.f32.mrf.mxu0
  %1386 = vmatprep.mubr.f32.mxu0 0.0
  %1387 = vmatmul.mubr.f32.gmra.mxu0 %v1219
  %v1388 = vpop.f32.mrf.mxu0
  %v1389 = vadd.f32 %v1069, %v1388
  %v1390 = vpop.f32.mrf.mxu0
  %1391 = vmatprep.mubr.f32.mxu0 0.0
  %1392 = vmatmul.mubr.f32.gmra.mxu0 %v1222
  %v1393 = vpop.f32.mrf.mxu0
  %v1394 = vadd.f32 %v1074, %v1393
  %v1395 = vpop.f32.mrf.mxu0
  %1396 = vmatprep.mubr.f32.mxu0 0.0
  %1397 = vmatmul.mubr.f32.gmra.mxu0 %v1225
  %v1398 = vpop.f32.mrf.mxu0
  %v1399 = vadd.f32 %v1079, %v1398
  %v1400 = vpop.f32.mrf.mxu0
  %1401 = vmatprep.mubr.f32.mxu0 0.0
  %1402 = vmatmul.mubr.f32.gmra.mxu0 %v1228
  %v1403 = vpop.f32.mrf.mxu0
  %v1404 = vadd.f32 %v1084, %v1403
  %v1405 = vpop.f32.mrf.mxu0
  %1406 = vmatprep.mubr.f32.mxu0 0.0
  %1407 = vmatmul.mubr.f32.gmra.mxu0 %v1231
  %v1408 = vpop.f32.mrf.mxu0
  %v1409 = vadd.f32 %v1089, %v1408
  %v1410 = vpop.f32.mrf.mxu0
  %1411 = vmatprep.mubr.f32.mxu0 0.0
  %1412 = vmatmul.mubr.f32.gmra.mxu0 %v1234
  %v1413 = vpop.f32.mrf.mxu0
  %v1414 = vadd.f32 %v1094, %v1413
  %v1415 = vpop.f32.mrf.mxu0
  %1416 = vmatprep.mubr.f32.mxu0 0.0
  %1417 = vmatmul.mubr.f32.gmra.mxu0 %v1237
  %v1418 = vpop.f32.mrf.mxu0
  %v1419 = vadd.f32 %v1099, %v1418
  %v1420 = vpop.f32.mrf.mxu0
  %1421 = vmatprep.mubr.f32.mxu0 0.0
  %1422 = vmatmul.mubr.f32.gmra.mxu0 %v1240
  %v1423 = vpop.f32.mrf.mxu0
  %v1424 = vadd.f32 %v1104, %v1423
  %v1425 = vpop.f32.mrf.mxu0
  %1426 = vmatprep.mubr.f32.mxu0 0.0
  %1427 = vmatmul.mubr.f32.gmra.mxu0 %v1243
  %v1428 = vpop.f32.mrf.mxu0
  %v1429 = vadd.f32 %v1109, %v1428
  %v1430 = vpop.f32.mrf.mxu0
  %1431 = vmatprep.mubr.f32.mxu0 0.0
  %1432 = vmatmul.mubr.f32.gmra.mxu0 %v1246
  %v1433 = vpop.f32.mrf.mxu0
  %v1434 = vadd.f32 %v1114, %v1433
  %v1435 = vpop.f32.mrf.mxu0
  %1436 = vmatprep.mubr.f32.mxu0 0.0
  %1437 = vmatmul.mubr.f32.gmra.mxu0 %v1249
  %v1438 = vpop.f32.mrf.mxu0
  %v1439 = vadd.f32 %v1119, %v1438
  %v1440 = vpop.f32.mrf.mxu0
  %1441 = vmatprep.mubr.f32.mxu0 0.0
  %1442 = vmatmul.mubr.f32.gmra.mxu0 %v1252
  %v1443 = vpop.f32.mrf.mxu0
  %v1444 = vadd.f32 %v1124, %v1443
  %v1445 = vpop.f32.mrf.mxu0
  %1446 = vmatprep.mubr.f32.mxu0 0.0
  %1447 = vmatmul.mubr.f32.gmra.mxu0 %v1255
  %v1448 = vpop.f32.mrf.mxu0
  %v1449 = vadd.f32 %v1129, %v1448
  %v1450 = vpop.f32.mrf.mxu0
  %1451 = vmatprep.mubr.f32.mxu0 0.0
  %1452 = vmatmul.mubr.f32.gmra.mxu0 %v1258
  %v1453 = vpop.f32.mrf.mxu0
  %v1454 = vadd.f32 %v1134, %v1453
  %v1455 = vpop.f32.mrf.mxu0
  %1456 = vmatprep.mubr.f32.mxu0 0.0
  %1457 = vmatmul.mubr.f32.gmra.mxu0 %v1261
  %v1458 = vpop.f32.mrf.mxu0
  %v1459 = vadd.f32 %v1139, %v1458
  %v1460 = vpop.f32.mrf.mxu0
  %1461 = vmatprep.mubr.f32.mxu0 0.0
  %1462 = vmatmul.mubr.f32.gmra.mxu0 %v1264
  %v1463 = vpop.f32.mrf.mxu0
  %v1464 = vadd.f32 %v1144, %v1463
  %v1465 = vpop.f32.mrf.mxu0
  %1466 = vmatprep.mubr.f32.mxu0 0.0
  %1467 = vmatmul.mubr.f32.gmra.mxu0 %v1267
  %v1468 = vpop.f32.mrf.mxu0
  %v1469 = vadd.f32 %v1149, %v1468
  %v1470 = vpop.f32.mrf.mxu0
  %1471 = vmatprep.mubr.f32.mxu0 0.0
  %1472 = vmatmul.mubr.f32.gmra.mxu0 %v1270
  %v1473 = vpop.f32.mrf.mxu0
  %v1474 = vadd.f32 %v1154, %v1473
  %v1475 = vpop.f32.mrf.mxu0
  %1476 = vmatprep.mubr.f32.mxu0 0.0
  %1477 = vmatmul.mubr.f32.gmra.mxu0 %v1273
  %v1478 = vpop.f32.mrf.mxu0
  %v1479 = vadd.f32 %v1159, %v1478
  %v1480 = vpop.f32.mrf.mxu0
  %1481 = vmatprep.mubr.f32.mxu0 0.0
  %1482 = vmatmul.mubr.f32.gmra.mxu0 %v1276
  %v1483 = vpop.f32.mrf.mxu0
  %v1484 = vadd.f32 %v1164, %v1483
  %v1485 = vpop.f32.mrf.mxu0
  %1486 = vmatprep.mubr.f32.mxu0 0.0
  %1487 = vmatmul.mubr.f32.gmra.mxu0 %v1279
  %v1488 = vpop.f32.mrf.mxu0
  %v1489 = vadd.f32 %v1169, %v1488
  %v1490 = vpop.f32.mrf.mxu0
  %1491 = vmatprep.mubr.f32.mxu0 0.0
  %1492 = vmatmul.mubr.f32.gmra.mxu0 %v1282
  %v1493 = vpop.f32.mrf.mxu0
  %v1494 = vadd.f32 %v1174, %v1493
  %v1495 = vpop.f32.mrf.mxu0
  %1496 = vmatprep.mubr.f32.mxu0 0.0
  %1497 = vmatmul.mubr.f32.gmra.mxu0 %v1285
  %v1498 = vpop.f32.mrf.mxu0
  %v1499 = vadd.f32 %v1179, %v1498
  %v1500 = vpop.f32.mrf.mxu0
  %1501 = vmatprep.mubr.f32.mxu0 0.0
  %1502 = vmatmul.mubr.f32.gmra.mxu0 %v1288
  %v1503 = vpop.f32.mrf.mxu0
  %v1504 = vadd.f32 %v1184, %v1503
  %v1505 = vpop.f32.mrf.mxu0
  %1506 = vmatprep.mubr.f32.mxu0 0.0
  %1507 = vmatmul.mubr.f32.gmra.mxu0 %v1291
  %v1508 = vpop.f32.mrf.mxu0
  %v1509 = vadd.f32 %v1189, %v1508
  %v1510 = vpop.f32.mrf.mxu0
  %1511 = vmatprep.mubr.f32.mxu0 0.0
  %1512 = vmatmul.mubr.f32.gmra.mxu0 %v1294
  %v1513 = vpop.f32.mrf.mxu0
  %v1514 = vadd.f32 %v1194, %v1513
  %v1515 = vpop.f32.mrf.mxu0
  %1516 = vmatprep.mubr.f32.mxu0 0.0
  %1517 = vmatmul.mubr.f32.gmra.mxu0 %v1297
  %v1518 = vpop.f32.mrf.mxu0
  %v1519 = vadd.f32 %v1199, %v1518
  %v1520 = vpop.f32.mrf.mxu0
  %1521 = vmatprep.mubr.f32.mxu0 0.0
  %1522 = vmatmul.mubr.f32.gmra.mxu0 %v1300
  %v1523 = vpop.f32.mrf.mxu0
  %v1524 = vadd.f32 %v1204, %v1523
  %v1525 = vpop.f32.mrf.mxu0
  %1526 = vdwg.mxu0
  %v1527 = vmax.f32 %v1369, 0.0
  %v1528 = vmax.f32 %v1374, 0.0
  %v1529 = vmax.f32 %v1379, 0.0
  %v1530 = vmax.f32 %v1384, 0.0
  %v1531 = vmax.f32 %v1389, 0.0
  %v1532 = vmax.f32 %v1394, 0.0
  %v1533 = vmax.f32 %v1399, 0.0
  %v1534 = vmax.f32 %v1404, 0.0
  %v1535 = vmax.f32 %v1409, 0.0
  %v1536 = vmax.f32 %v1414, 0.0
  %v1537 = vmax.f32 %v1419, 0.0
  %v1538 = vmax.f32 %v1424, 0.0
  %v1539 = vmax.f32 %v1429, 0.0
  %v1540 = vmax.f32 %v1434, 0.0
  %v1541 = vmax.f32 %v1439, 0.0
  %v1542 = vmax.f32 %v1444, 0.0
  %v1543 = vmax.f32 %v1449, 0.0
  %v1544 = vmax.f32 %v1454, 0.0
  %v1545 = vmax.f32 %v1459, 0.0
  %v1546 = vmax.f32 %v1464, 0.0
  %v1547 = vmax.f32 %v1469, 0.0
  %v1548 = vmax.f32 %v1474, 0.0
  %v1549 = vmax.f32 %v1479, 0.0
  %v1550 = vmax.f32 %v1484, 0.0
  %v1551 = vmax.f32 %v1489, 0.0
  %v1552 = vmax.f32 %v1494, 0.0
  %v1553 = vmax.f32 %v1499, 0.0
  %v1554 = vmax.f32 %v1504, 0.0
  %v1555 = vmax.f32 %v1509, 0.0
  %v1556 = vmax.f32 %v1514, 0.0
  %v1557 = vmax.f32 %v1519, 0.0
  %v1558 = vmax.f32 %v1524, 0.0
  %v1559 = vld [vmem:[%s10] sm:$0xff]
  %v1560 = vld [vmem:[%s10 + $0x8] sm:$0xff]
  %v1561 = vld [vmem:[%s10 + $0x10] sm:$0xff]
  %v1562 = vld [vmem:[%s10 + $0x18] sm:$0xff]
  %v1563 = vld [vmem:[%s10 + $0x20] sm:$0xff]
  %v1564 = vld [vmem:[%s10 + $0x28] sm:$0xff]
  %v1565 = vld [vmem:[%s10 + $0x30] sm:$0xff]
  %v1566 = vld [vmem:[%s10 + $0x38] sm:$0xff]
  %v1567 = vld [vmem:[%s11] sm:$0xff]
  %v1568 = vld [vmem:[%s11 + $0x8] sm:$0xff]
  %v1569 = vld [vmem:[%s11 + $0x10] sm:$0xff]
  %v1570 = vld [vmem:[%s11 + $0x18] sm:$0xff]
  %1572 = vset.pattern.permute.xlu0 0
  %1573 = vperm.xlu0 %1572, %v1567
  %v1574 = vpop.permute.xlu0 %1573
  %1577 = vset.pattern.permute.xlu0 0
  %1578 = vperm.xlu0 %1577, %v1568
  %v1579 = vpop.permute.xlu0 %1578
  %1582 = vset.pattern.permute.xlu0 0
  %1583 = vperm.xlu0 %1582, %v1569
  %v1584 = vpop.permute.xlu0 %1583
  %1587 = vset.pattern.permute.xlu0 0
  %1588 = vperm.xlu0 %1587, %v1570
  %v1589 = vpop.permute.xlu0 %1588
  %1591 = vmatprep.subr.mxu0 0.0
  %1592 = vmatpush1.msra.mxu0 %v1542
  %1593 = vmatprep.subr.mxu0 0.0
  %1594 = vmatpush1.msra.mxu0 %v1541
  %1595 = vmatprep.subr.mxu0 0.0
  %1596 = vmatpush1.msra.mxu0 %v1540
  %1597 = vmatprep.subr.mxu0 0.0
  %1598 = vmatpush1.msra.mxu0 %v1539
  %1599 = vmatprep.subr.mxu0 0.0
  %1600 = vmatpush1.msra.mxu0 %v1538
  %1601 = vmatprep.subr.mxu0 0.0
  %1602 = vmatpush1.msra.mxu0 %v1537
  %1603 = vmatprep.subr.mxu0 0.0
  %1604 = vmatpush1.msra.mxu0 %v1536
  %1605 = vmatprep.subr.mxu0 0.0
  %1606 = vmatpush1.msra.mxu0 %v1535
  %1607 = vmatprep.subr.mxu0 0.0
  %1608 = vmatpush1.msra.mxu0 %v1534
  %1609 = vmatprep.subr.mxu0 0.0
  %1610 = vmatpush1.msra.mxu0 %v1533
  %1611 = vmatprep.subr.mxu0 0.0
  %1612 = vmatpush1.msra.mxu0 %v1532
  %1613 = vmatprep.subr.mxu0 0.0
  %1614 = vmatpush1.msra.mxu0 %v1531
  %1615 = vmatprep.subr.mxu0 0.0
  %1616 = vmatpush1.msra.mxu0 %v1530
  %1617 = vmatprep.subr.mxu0 0.0
  %1618 = vmatpush1.msra.mxu0 %v1529
  %1619 = vmatprep.subr.mxu0 0.0
  %1620 = vmatpush1.msra.mxu0 %v1528
  %1621 = vmatprep.subr.mxu0 0.0
  %1622 = vmatpush1.msra.mxu0 %v1527
  %1623 = vmatprep.subr.mxu0 0.0
  %1624 = vmatpush2.msra.mxu0 %v1558
  %1625 = vmatprep.subr.mxu0 0.0
  %1626 = vmatpush2.msra.mxu0 %v1557
  %1627 = vmatprep.subr.mxu0 0.0
  %1628 = vmatpush2.msra.mxu0 %v1556
  %1629 = vmatprep.subr.mxu0 0.0
  %1630 = vmatpush2.msra.mxu0 %v1555
  %1631 = vmatprep.subr.mxu0 0.0
  %1632 = vmatpush2.msra.mxu0 %v1554
  %1633 = vmatprep.subr.mxu0 0.0
  %1634 = vmatpush2.msra.mxu0 %v1553
  %1635 = vmatprep.subr.mxu0 0.0
  %1636 = vmatpush2.msra.mxu0 %v1552
  %1637 = vmatprep.subr.mxu0 0.0
  %1638 = vmatpush2.msra.mxu0 %v1551
  %1639 = vmatprep.subr.mxu0 0.0
  %1640 = vmatpush2.msra.mxu0 %v1550
  %1641 = vmatprep.subr.mxu0 0.0
  %1642 = vmatpush2.msra.mxu0 %v1549
  %1643 = vmatprep.subr.mxu0 0.0
  %1644 = vmatpush2.msra.mxu0 %v1548
  %1645 = vmatprep.subr.mxu0 0.0
  %1646 = vmatpush2.msra.mxu0 %v1547
  %1647 = vmatprep.subr.mxu0 0.0
  %1648 = vmatpush2.msra.mxu0 %v1546
  %1649 = vmatprep.subr.mxu0 0.0
  %1650 = vmatpush2.msra.mxu0 %v1545
  %1651 = vmatprep.subr.mxu0 0.0
  %1652 = vmatpush2.msra.mxu0 %v1544
  %1653 = vmatprep.subr.mxu0 0.0
  %1654 = vmatpush2.msra.mxu0 %v1543
  %1655 = vmatprep.mubr.f32.mxu0 %v1560
  %1656 = vmatmul.mubr.f32.gmra.mxu0 %v1559
  %v1657 = vpop.f32.mrf.mxu0
  %v1658 = vadd.f32 %v1574, %v1657
  %v1659 = vpop.f32.mrf.mxu0
  %1660 = vmatprep.mubr.f32.mxu0 %v1562
  %1661 = vmatmul.mubr.f32.gmra.mxu0 %v1561
  %v1662 = vpop.f32.mrf.mxu0
  %v1663 = vadd.f32 %v1579, %v1662
  %v1664 = vpop.f32.mrf.mxu0
  %1665 = vmatprep.mubr.f32.mxu0 %v1564
  %1666 = vmatmul.mubr.f32.gmra.mxu0 %v1563
  %v1667 = vpop.f32.mrf.mxu0
  %v1668 = vadd.f32 %v1584, %v1667
  %v1669 = vpop.f32.mrf.mxu0
  %1670 = vmatprep.mubr.f32.mxu0 %v1566
  %1671 = vmatmul.mubr.f32.gmra.mxu0 %v1565
  %v1672 = vpop.f32.mrf.mxu0
  %v1673 = vadd.f32 %v1589, %v1672
  %v1674 = vpop.f32.mrf.mxu0
  %1675 = vdwg.mxu0
  %vm1676 = vcmask 31744
  %1677 = vst.msk [vmem:[%s12] sm:$0xff] %vm1676, %v722
  %1678 = vst.msk [vmem:[%s12 + $0x8] sm:$0xff] %vm1676, %v727
  %1679 = vst.msk [vmem:[%s12 + $0x10] sm:$0xff] %vm1676, %v732
  %1680 = vst.msk [vmem:[%s12 + $0x18] sm:$0xff] %vm1676, %v737
  %1681 = vst.msk [vmem:[%s12 + $0x20] sm:$0xff] %vm1676, %v869
  %1682 = vst.msk [vmem:[%s12 + $0x28] sm:$0xff] %vm1676, %v870
  %1683 = vst.msk [vmem:[%s12 + $0x30] sm:$0xff] %vm1676, %v871
  %1684 = vst.msk [vmem:[%s12 + $0x38] sm:$0xff] %vm1676, %v872
  %1685 = vst.msk [vmem:[%s12 + $0x40] sm:$0xff] %vm1676, %v978
  %1686 = vst.msk [vmem:[%s12 + $0x48] sm:$0xff] %vm1676, %v979
  %1687 = vst.msk [vmem:[%s12 + $0x50] sm:$0xff] %vm1676, %v980
  %1688 = vst.msk [vmem:[%s12 + $0x58] sm:$0xff] %vm1676, %v981
  %1689 = vst.msk [vmem:[%s12 + $0x60] sm:$0xff] %vm1676, %v1658
  %1690 = vst.msk [vmem:[%s12 + $0x68] sm:$0xff] %vm1676, %v1663
  %1691 = vst.msk [vmem:[%s12 + $0x70] sm:$0xff] %vm1676, %v1668
  %1692 = vst.msk [vmem:[%s12 + $0x78] sm:$0xff] %vm1676, %v1673
  // Predicated region
  $region50: #{tpu_custom_call.1} parent=0 // pred_check
    _
  $region51: #{tpu_custom_call.1} parent=0 // pred_check_branch
    %1694 = sbr.rel (0) target = $region53
  $region52: #{tpu_custom_call.1} parent=0 // pred_region
    _
  $region53: #{tpu_custom_call.1} parent=0 // pred_fallthru
    _
  // Predicated region
  $region54: #{tpu_custom_call.1} parent=0 // pred_check
    _
  $region55: #{tpu_custom_call.1} parent=0 // pred_check_branch
    %1696 = sbr.rel (0) target = $region57
  $region56: #{tpu_custom_call.1} parent=0 // pred_region
    _
  $region57: #{tpu_custom_call.1} parent=0 // pred_fallthru
    _

</llo_original>
